<compile_context>
chip_gen: v7x
topology: tpu7x:2x2x1
jax: 0.10.0
libtpu: 0.0.40
codegen_flags: <defaults>
</compile_context>

<pallas_src>
import functools
import math

import jax
import jax.numpy as jnp
from jax import lax
from jax.experimental import pallas as pl
from jax.experimental.pallas import tpu as pltpu


# ---------------------------------------------------------------------------
# Fused BN + ReLU + implicit-GEMM conv kernel (one image per grid step)
# ---------------------------------------------------------------------------

def _make_fused_kernel(H, W, Cin, Cout, KH, KW, stride, pad,
                       mxu_dtype, scratch_dtype):
    Hp, Wp = H + 2 * pad, W + 2 * pad
    Ho = (Hp - KH) // stride + 1
    Wo = (Wp - KW) // stride + 1
    K = KH * KW * Cin                 # GEMM contraction dim
    Mw = Ho * Wp                      # "wide" GEMM N dim (KW-1 garbage cols/row)
    # Flattened padded-activation length (+ tail so the last tap's slab stays
    # in bounds; the tail and the padded border remain zero).
    L = (KH - 1) * Wp + (KW - 1) + stride * (Mw - 1) + 1

    def kernel(x_ref, scale_ref, bias_ref, w_ref, o_ref, yflat_ref, p_ref):
        # x_ref:     (1, Cin, H, W) f32    raw NCHW image (no pre-pad/transpose)
        # scale_ref: (Cin, 1) f32          folded BN scale = gamma/sqrt(var+eps)
        # bias_ref:  (Cin, 1) f32          folded BN bias  = beta - mean*scale
        # w_ref:     (Cout, K) mxu_dtype   conv taps, K index = (ki*KW+kj)*Cin+c
        # o_ref:     (1, Cout, Ho*Wo) f32  lane-dense output block
        # yflat_ref: (Cin, L) scratch      zero-padded activation, spatially flat
        # p_ref:     (K, Mw)  scratch      im2col patch matrix (VMEM only)

        # --- fused BatchNorm + ReLU into the zero-padded flat scratch --------
        # Zero fill implements the conv's spatial zero padding (and the tail).
        yflat_ref[...] = jnp.zeros((Cin, L), scratch_dtype)
        x = x_ref[0]                                   # (Cin, H, W) f32
        scale = scale_ref[...]                         # (Cin, 1)
        bias = bias_ref[...]                           # (Cin, 1)
        for h in range(H):                             # static unroll over rows
            yrow = jnp.maximum(x[:, h, :] * scale + bias, 0.0)      # (Cin, W)
            yflat_ref[:, pl.ds((pad + h) * Wp + pad, W)] = (
                yrow.astype(scratch_dtype))

        # --- implicit im2col: each tap is a CONTIGUOUS slab of yflat ---------
        # P[(ki*KW+kj)*Cin + c, oy*Wp + ox] = ypad[c, oy*stride+ki, ox*stride+kj]
        # (columns with ox >= Wo wrap around to the next row: garbage, dropped
        #  at the output stage).  The patch matrix never touches HBM.
        for ki in range(KH):
            for kj in range(KW):
                base = ki * Wp + kj
                if stride == 1:
                    slab = yflat_ref[:, pl.ds(base, Mw)]
                else:
                    slab = yflat_ref[:, pl.ds(base, Mw, stride)]
                p_ref[pl.ds((ki * KW + kj) * Cin, Cin), :] = slab

        # --- single MXU GEMM, bf16 operands, f32 accumulation ----------------
        acc = jnp.dot(w_ref[...], p_ref[...].astype(mxu_dtype),
                      preferred_element_type=jnp.float32)      # (Cout, Mw) f32

        # --- drop the KW-1 garbage columns per output row (VMEM-side only;
        #     the HBM writeback of the dense (Cout, Ho*Wo) block is one DMA) --
        if Wo == Wp:
            o_ref[0] = acc.astype(o_ref.dtype)
        else:
            for oy in range(Ho):
                o_ref[0, :, pl.ds(oy * Wo, Wo)] = (
                    acc[:, oy * Wp: oy * Wp + Wo].astype(o_ref.dtype))

    return kernel, Ho, Wo, K, Mw, L


def _vmem_budget_bytes():
    """Generation-aware VMEM cap: ~80% of physical (64 MiB v7x, 128 MiB v5e/v6e)."""
    try:
        cap = int(pltpu.get_tpu_info().vmem_capacity_bytes)
    except Exception:
        cap = 64 * 1024 * 1024
    return max(int(cap * 0.8), 16 * 1024 * 1024)


# ---------------------------------------------------------------------------
# Forward wrapper (NCHW in / NCHW out, PyTorch semantics)
# ---------------------------------------------------------------------------

@functools.partial(jax.jit, static_argnames=("stride", "padding", "mxu_dtype"))
def iconv2d_forward(x_nchw, gamma, beta, conv_w, *, stride=1, padding=1,
                    mxu_dtype=jnp.bfloat16):
    """BN (training-mode batch stats, eps=1e-3) -> ReLU -> Conv2d (no bias)."""
    eps = 0.001
    N, Cin, H, W = x_nchw.shape
    Cout, Cin_w, KH, KW = conv_w.shape
    assert Cin_w == Cin
    pad = padding

    x32 = x_nchw.astype(jnp.float32)

    # --- BatchNorm batch statistics in ONE pass over x (sum + sum-of-squares
    # are sibling reductions of the same operand -> one fused HBM read).
    # Clamp var >= 0: the one-pass E[x^2]-E[x]^2 form can cancel to slightly
    # negative in f32.
    cnt = N * H * W
    s1 = jnp.sum(x32, axis=(0, 2, 3))
    s2 = jnp.sum(x32 * x32, axis=(0, 2, 3))
    mean = s1 / cnt
    var = jnp.maximum(s2 / cnt - mean * mean, 0.0)      # biased (training) var
    scale = gamma.astype(jnp.float32) / jnp.sqrt(var + eps)
    bias = beta.astype(jnp.float32) - mean * scale

    # bf16 scratches are safe when Cin packs evenly along sublanes; otherwise
    # fall back to f32 scratches (operands are still cast to bf16 at the dot).
    scratch_dtype = mxu_dtype if Cin % 2 == 0 else jnp.float32

    kernel, Ho, Wo, K, Mw, L = _make_fused_kernel(
        H, W, Cin, Cout, KH, KW, stride, pad, mxu_dtype, scratch_dtype)

    # --- Conv taps: (Cout, Cin, KH, KW) -> (Cout, KH*KW*Cin), tap-major /
    # channel-minor to match the patch-matrix row order. Tiny, one-time.
    w2d = (jnp.transpose(conv_w, (0, 2, 3, 1))
           .reshape(Cout, K).astype(mxu_dtype))

    # --- VMEM footprint: double-buffered in/out blocks + resident weights +
    # scratches + GEMM operand/accumulator temporaries, with margin; clamped
    # to a generation-aware budget (v7x 64 MiB physical, v5e/v6e 128 MiB).
    ws = jnp.dtype(mxu_dtype).itemsize
    ss = jnp.dtype(scratch_dtype).itemsize
    est = (2 * Cin * H * W * 4             # input image block (x2 buffers)
           + 2 * Cout * Ho * Wo * 4        # output block (x2 buffers)
           + 2 * Cout * K * ws             # resident weight block
           + Cin * L * ss                  # flattened padded activation
           + K * Mw * (ss + ws)            # patch scratch + bf16 operand copy
           + 2 * Cout * Mw * 4)            # f32 accumulator + extraction temps
    vmem_limit = int(min(max(3 * est, 16 * 1024 * 1024), _vmem_budget_bytes()))

    out = pl.pallas_call(
        kernel,
        out_shape=jax.ShapeDtypeStruct((N, Cout, Ho * Wo), jnp.float32),
        grid_spec=pltpu.PrefetchScalarGridSpec(
            num_scalar_prefetch=0,
            grid=(N,),                    # one image per step, sharded over TCs
            in_specs=[
                pl.BlockSpec((1, Cin, H, W), lambda n: (n, 0, 0, 0)),
                pl.BlockSpec((Cin, 1), lambda n: (0, 0)),
                pl.BlockSpec((Cin, 1), lambda n: (0, 0)),
                pl.BlockSpec((Cout, K), lambda n: (0, 0)),
            ],
            out_specs=pl.BlockSpec((1, Cout, Ho * Wo), lambda n: (n, 0, 0)),
            scratch_shapes=[
                pltpu.VMEM((Cin, L), scratch_dtype),   # padded flat activation
                pltpu.VMEM((K, Mw), scratch_dtype),    # im2col patch matrix
            ],
        ),
        compiler_params=pltpu.CompilerParams(
            dimension_semantics=("parallel",),
            vmem_limit_bytes=vmem_limit,
        ),
    )(x32, scale.reshape(Cin, 1), bias.reshape(Cin, 1), w2d)

    # TODO(synk): for large feature maps (per-image activation > VMEM) add an
    # Ho-tile grid axis (halo'd slab offsets) and batch several small images
    # per step when N is large, to deepen the pipeline further.
    return out.reshape(N, Cout, Ho, Wo)       # free metadata reshape -> NCHW


# ---------------------------------------------------------------------------
# Deterministic parameter init (mirrors the PyTorch __init__)
# ---------------------------------------------------------------------------

def init_params(key, in_channels, out_channels, kh, kw):
    # BatchNorm2d(affine=True) defaults: weight=1, bias=0.
    gamma = jnp.ones((in_channels,), jnp.float32)
    beta = jnp.zeros((in_channels,), jnp.float32)
    # xavier_uniform_ for the conv weight (gain=1).
    fan_in = in_channels * kh * kw
    fan_out = out_channels * kh * kw
    bound = math.sqrt(6.0 / (fan_in + fan_out))
    conv_w = jax.random.uniform(
        key, (out_channels, in_channels, kh, kw),
        minval=-bound, maxval=bound, dtype=jnp.float32,
    )
    return gamma, beta, conv_w


if __name__ == "__main__":
    key = jax.random.PRNGKey(0)
    k_x, k_w = jax.random.split(key)

    N, Cin, H, W = 2, 4, 16, 16
    Cout, KH, KW = 8, 3, 3

    x = jax.random.normal(k_x, (N, Cin, H, W), dtype=jnp.float32)
    gamma, beta, conv_w = init_params(k_w, Cin, Cout, KH, KW)

    out = iconv2d_forward(x, gamma, beta, conv_w, stride=1, padding=1)
    out = jax.block_until_ready(out)
    assert out.shape == (N, Cout, H, W)

    # --- Pure-JAX reference with the same training-mode BN semantics.
    mean = jnp.mean(x, axis=(0, 2, 3), keepdims=True)
    var = jnp.mean((x - mean) ** 2, axis=(0, 2, 3), keepdims=True)
    y = jnp.maximum(
        (x - mean) / jnp.sqrt(var + 0.001) * gamma.reshape(1, -1, 1, 1)
        + beta.reshape(1, -1, 1, 1), 0.0)

    # Kernel feeds the MXU bf16 operands with f32 accumulation: check against a
    # precision-matched reference ...
    ref_bf16 = lax.conv_general_dilated(
        y.astype(jnp.bfloat16), conv_w.astype(jnp.bfloat16),
        window_strides=(1, 1), padding=((1, 1), (1, 1)),
        dimension_numbers=("NCHW", "OIHW", "NCHW"),
        preferred_element_type=jnp.float32)
    assert jnp.allclose(out, ref_bf16, atol=2e-2, rtol=2e-2)

    # ... and a looser check against the full-f32 reference (bf16 operand
    # rounding only).
    ref_f32 = lax.conv_general_dilated(
        y, conv_w, window_strides=(1, 1), padding=((1, 1), (1, 1)),
        dimension_numbers=("NCHW", "OIHW", "NCHW"))
    assert jnp.allclose(out, ref_f32, atol=5e-2, rtol=5e-2)

    print("KERNEL_OK")
</pallas_src>

<mosaic_0001>
module attributes {stable_mosaic.version = 11 : i64} {
  func.func @kernel(%arg0: i32, %arg1: memref<1x4x16x16xf32, #tpu.memory_space<vmem>>, %arg2: memref<4x1xf32, #tpu.memory_space<vmem>>, %arg3: memref<4x1xf32, #tpu.memory_space<vmem>>, %arg4: memref<8x36xbf16, #tpu.memory_space<vmem>>, %arg5: memref<1x8x256xf32, #tpu.memory_space<vmem>>, %arg6: memref<4x326xbf16, #tpu.memory_space<vmem>>, %arg7: memref<36x288xbf16, #tpu.memory_space<vmem>>) attributes {dimension_semantics = [#tpu.dimension_semantics<parallel>], iteration_bounds = array<i64: 2>, scalar_prefetch = 0 : i64, scratch_operands = 2 : i64, tpu.core_type = #tpu.core_type<tc>, window_params = [{transform_indices = @transform_0, window_bounds = array<i64: 1, 4, 16, 16>}, {pipeline_mode = #tpu.pipeline_mode<synchronous>, transform_indices = @transform_1, window_bounds = array<i64: 4, 1>}, {pipeline_mode = #tpu.pipeline_mode<synchronous>, transform_indices = @transform_2, window_bounds = array<i64: 4, 1>}, {pipeline_mode = #tpu.pipeline_mode<synchronous>, transform_indices = @transform_3, window_bounds = array<i64: 8, 36>}, {transform_indices = @transform_4, window_bounds = array<i64: 1, 8, 256>}]} {
    %cst = arith.constant 0.000000e+00 : bf16
    %0 = vector.broadcast %cst : bf16 to vector<4x326xbf16>
    %c0 = arith.constant 0 : index
    %c0_0 = arith.constant 0 : index
    %1 = vector.load %arg6[%c0, %c0_0] : memref<4x326xbf16, #tpu.memory_space<vmem>>, vector<4x326xbf16>
    tpu.vector_store %arg6[%c0, %c0_0], %0 {strides = array<i32>} : memref<4x326xbf16, #tpu.memory_space<vmem>>, vector<4x326xbf16>,
    %c0_1 = arith.constant 0 : index
    %c0_2 = arith.constant 0 : index
    %c0_3 = arith.constant 0 : index
    %c0_4 = arith.constant 0 : index
    %2 = vector.load %arg1[%c0_1, %c0_2, %c0_3, %c0_4] : memref<1x4x16x16xf32, #tpu.memory_space<vmem>>, vector<1x4x16x16xf32>
    %3 = vector.shape_cast %2 : vector<1x4x16x16xf32> to vector<4x16x16xf32>
    %c0_5 = arith.constant 0 : index
    %c0_6 = arith.constant 0 : index
    %4 = vector.load %arg2[%c0_5, %c0_6] : memref<4x1xf32, #tpu.memory_space<vmem>>, vector<4x1xf32>
    %c0_7 = arith.constant 0 : index
    %c0_8 = arith.constant 0 : index
    %5 = vector.load %arg3[%c0_7, %c0_8] : memref<4x1xf32, #tpu.memory_space<vmem>>, vector<4x1xf32>
    %6 = vector.extract_strided_slice %3 {offsets = [0, 0, 0], sizes = [4, 1, 16], strides = [1, 1, 1]} : vector<4x16x16xf32> to vector<4x1x16xf32>
    %7 = vector.shape_cast %6 : vector<4x1x16xf32> to vector<4x16xf32>
    %8 = vector.broadcast %4 : vector<4x1xf32> to vector<4x16xf32>
    %9 = arith.mulf %7, %8 : vector<4x16xf32>
    %10 = vector.broadcast %5 : vector<4x1xf32> to vector<4x16xf32>
    %11 = arith.addf %9, %10 : vector<4x16xf32>
    %cst_9 = arith.constant 0.000000e+00 : f32
    %12 = vector.broadcast %cst_9 : f32 to vector<4x16xf32>
    %13 = arith.maximumf %11, %12 : vector<4x16xf32>
    %14 = arith.truncf %13 : vector<4x16xf32> to vector<4x16xbf16>
    %c0_10 = arith.constant 0 : index
    %c19 = arith.constant 19 : index
    %15 = vector.load %arg6[%c0_10, %c19] : memref<4x326xbf16, #tpu.memory_space<vmem>>, vector<4x16xbf16>
    tpu.vector_store %arg6[%c0_10, %c19], %14 {strides = array<i32>} : memref<4x326xbf16, #tpu.memory_space<vmem>>, vector<4x16xbf16>,
    %16 = vector.extract_strided_slice %3 {offsets = [0, 1, 0], sizes = [4, 1, 16], strides = [1, 1, 1]} : vector<4x16x16xf32> to vector<4x1x16xf32>
    %17 = vector.shape_cast %16 : vector<4x1x16xf32> to vector<4x16xf32>
    %18 = vector.broadcast %4 : vector<4x1xf32> to vector<4x16xf32>
    %19 = arith.mulf %17, %18 : vector<4x16xf32>
    %20 = vector.broadcast %5 : vector<4x1xf32> to vector<4x16xf32>
    %21 = arith.addf %19, %20 : vector<4x16xf32>
    %cst_11 = arith.constant 0.000000e+00 : f32
    %22 = vector.broadcast %cst_11 : f32 to vector<4x16xf32>
    %23 = arith.maximumf %21, %22 : vector<4x16xf32>
    %24 = arith.truncf %23 : vector<4x16xf32> to vector<4x16xbf16>
    %c0_12 = arith.constant 0 : index
    %c37 = arith.constant 37 : index
    %25 = vector.load %arg6[%c0_12, %c37] : memref<4x326xbf16, #tpu.memory_space<vmem>>, vector<4x16xbf16>
    tpu.vector_store %arg6[%c0_12, %c37], %24 {strides = array<i32>} : memref<4x326xbf16, #tpu.memory_space<vmem>>, vector<4x16xbf16>,
    %26 = vector.extract_strided_slice %3 {offsets = [0, 2, 0], sizes = [4, 1, 16], strides = [1, 1, 1]} : vector<4x16x16xf32> to vector<4x1x16xf32>
    %27 = vector.shape_cast %26 : vector<4x1x16xf32> to vector<4x16xf32>
    %28 = vector.broadcast %4 : vector<4x1xf32> to vector<4x16xf32>
    %29 = arith.mulf %27, %28 : vector<4x16xf32>
    %30 = vector.broadcast %5 : vector<4x1xf32> to vector<4x16xf32>
    %31 = arith.addf %29, %30 : vector<4x16xf32>
    %cst_13 = arith.constant 0.000000e+00 : f32
    %32 = vector.broadcast %cst_13 : f32 to vector<4x16xf32>
    %33 = arith.maximumf %31, %32 : vector<4x16xf32>
    %34 = arith.truncf %33 : vector<4x16xf32> to vector<4x16xbf16>
    %c0_14 = arith.constant 0 : index
    %c55 = arith.constant 55 : index
    %35 = vector.load %arg6[%c0_14, %c55] : memref<4x326xbf16, #tpu.memory_space<vmem>>, vector<4x16xbf16>
    tpu.vector_store %arg6[%c0_14, %c55], %34 {strides = array<i32>} : memref<4x326xbf16, #tpu.memory_space<vmem>>, vector<4x16xbf16>,
    %36 = vector.extract_strided_slice %3 {offsets = [0, 3, 0], sizes = [4, 1, 16], strides = [1, 1, 1]} : vector<4x16x16xf32> to vector<4x1x16xf32>
    %37 = vector.shape_cast %36 : vector<4x1x16xf32> to vector<4x16xf32>
    %38 = vector.broadcast %4 : vector<4x1xf32> to vector<4x16xf32>
    %39 = arith.mulf %37, %38 : vector<4x16xf32>
    %40 = vector.broadcast %5 : vector<4x1xf32> to vector<4x16xf32>
    %41 = arith.addf %39, %40 : vector<4x16xf32>
    %cst_15 = arith.constant 0.000000e+00 : f32
    %42 = vector.broadcast %cst_15 : f32 to vector<4x16xf32>
    %43 = arith.maximumf %41, %42 : vector<4x16xf32>
    %44 = arith.truncf %43 : vector<4x16xf32> to vector<4x16xbf16>
    %c0_16 = arith.constant 0 : index
    %c73 = arith.constant 73 : index
    %45 = vector.load %arg6[%c0_16, %c73] : memref<4x326xbf16, #tpu.memory_space<vmem>>, vector<4x16xbf16>
    tpu.vector_store %arg6[%c0_16, %c73], %44 {strides = array<i32>} : memref<4x326xbf16, #tpu.memory_space<vmem>>, vector<4x16xbf16>,
    %46 = vector.extract_strided_slice %3 {offsets = [0, 4, 0], sizes = [4, 1, 16], strides = [1, 1, 1]} : vector<4x16x16xf32> to vector<4x1x16xf32>
    %47 = vector.shape_cast %46 : vector<4x1x16xf32> to vector<4x16xf32>
    %48 = vector.broadcast %4 : vector<4x1xf32> to vector<4x16xf32>
    %49 = arith.mulf %47, %48 : vector<4x16xf32>
    %50 = vector.broadcast %5 : vector<4x1xf32> to vector<4x16xf32>
    %51 = arith.addf %49, %50 : vector<4x16xf32>
    %cst_17 = arith.constant 0.000000e+00 : f32
    %52 = vector.broadcast %cst_17 : f32 to vector<4x16xf32>
    %53 = arith.maximumf %51, %52 : vector<4x16xf32>
    %54 = arith.truncf %53 : vector<4x16xf32> to vector<4x16xbf16>
    %c0_18 = arith.constant 0 : index
    %c91 = arith.constant 91 : index
    %55 = vector.load %arg6[%c0_18, %c91] : memref<4x326xbf16, #tpu.memory_space<vmem>>, vector<4x16xbf16>
    tpu.vector_store %arg6[%c0_18, %c91], %54 {strides = array<i32>} : memref<4x326xbf16, #tpu.memory_space<vmem>>, vector<4x16xbf16>,
    %56 = vector.extract_strided_slice %3 {offsets = [0, 5, 0], sizes = [4, 1, 16], strides = [1, 1, 1]} : vector<4x16x16xf32> to vector<4x1x16xf32>
    %57 = vector.shape_cast %56 : vector<4x1x16xf32> to vector<4x16xf32>
    %58 = vector.broadcast %4 : vector<4x1xf32> to vector<4x16xf32>
    %59 = arith.mulf %57, %58 : vector<4x16xf32>
    %60 = vector.broadcast %5 : vector<4x1xf32> to vector<4x16xf32>
    %61 = arith.addf %59, %60 : vector<4x16xf32>
    %cst_19 = arith.constant 0.000000e+00 : f32
    %62 = vector.broadcast %cst_19 : f32 to vector<4x16xf32>
    %63 = arith.maximumf %61, %62 : vector<4x16xf32>
    %64 = arith.truncf %63 : vector<4x16xf32> to vector<4x16xbf16>
    %c0_20 = arith.constant 0 : index
    %c109 = arith.constant 109 : index
    %65 = vector.load %arg6[%c0_20, %c109] : memref<4x326xbf16, #tpu.memory_space<vmem>>, vector<4x16xbf16>
    tpu.vector_store %arg6[%c0_20, %c109], %64 {strides = array<i32>} : memref<4x326xbf16, #tpu.memory_space<vmem>>, vector<4x16xbf16>,
    %66 = vector.extract_strided_slice %3 {offsets = [0, 6, 0], sizes = [4, 1, 16], strides = [1, 1, 1]} : vector<4x16x16xf32> to vector<4x1x16xf32>
    %67 = vector.shape_cast %66 : vector<4x1x16xf32> to vector<4x16xf32>
    %68 = vector.broadcast %4 : vector<4x1xf32> to vector<4x16xf32>
    %69 = arith.mulf %67, %68 : vector<4x16xf32>
    %70 = vector.broadcast %5 : vector<4x1xf32> to vector<4x16xf32>
    %71 = arith.addf %69, %70 : vector<4x16xf32>
    %cst_21 = arith.constant 0.000000e+00 : f32
    %72 = vector.broadcast %cst_21 : f32 to vector<4x16xf32>
    %73 = arith.maximumf %71, %72 : vector<4x16xf32>
    %74 = arith.truncf %73 : vector<4x16xf32> to vector<4x16xbf16>
    %c0_22 = arith.constant 0 : index
    %c127 = arith.constant 127 : index
    %75 = vector.load %arg6[%c0_22, %c127] : memref<4x326xbf16, #tpu.memory_space<vmem>>, vector<4x16xbf16>
    tpu.vector_store %arg6[%c0_22, %c127], %74 {strides = array<i32>} : memref<4x326xbf16, #tpu.memory_space<vmem>>, vector<4x16xbf16>,
    %76 = vector.extract_strided_slice %3 {offsets = [0, 7, 0], sizes = [4, 1, 16], strides = [1, 1, 1]} : vector<4x16x16xf32> to vector<4x1x16xf32>
    %77 = vector.shape_cast %76 : vector<4x1x16xf32> to vector<4x16xf32>
    %78 = vector.broadcast %4 : vector<4x1xf32> to vector<4x16xf32>
    %79 = arith.mulf %77, %78 : vector<4x16xf32>
    %80 = vector.broadcast %5 : vector<4x1xf32> to vector<4x16xf32>
    %81 = arith.addf %79, %80 : vector<4x16xf32>
    %cst_23 = arith.constant 0.000000e+00 : f32
    %82 = vector.broadcast %cst_23 : f32 to vector<4x16xf32>
    %83 = arith.maximumf %81, %82 : vector<4x16xf32>
    %84 = arith.truncf %83 : vector<4x16xf32> to vector<4x16xbf16>
    %c0_24 = arith.constant 0 : index
    %c145 = arith.constant 145 : index
    %85 = vector.load %arg6[%c0_24, %c145] : memref<4x326xbf16, #tpu.memory_space<vmem>>, vector<4x16xbf16>
    tpu.vector_store %arg6[%c0_24, %c145], %84 {strides = array<i32>} : memref<4x326xbf16, #tpu.memory_space<vmem>>, vector<4x16xbf16>,
    %86 = vector.extract_strided_slice %3 {offsets = [0, 8, 0], sizes = [4, 1, 16], strides = [1, 1, 1]} : vector<4x16x16xf32> to vector<4x1x16xf32>
    %87 = vector.shape_cast %86 : vector<4x1x16xf32> to vector<4x16xf32>
    %88 = vector.broadcast %4 : vector<4x1xf32> to vector<4x16xf32>
    %89 = arith.mulf %87, %88 : vector<4x16xf32>
    %90 = vector.broadcast %5 : vector<4x1xf32> to vector<4x16xf32>
    %91 = arith.addf %89, %90 : vector<4x16xf32>
    %cst_25 = arith.constant 0.000000e+00 : f32
    %92 = vector.broadcast %cst_25 : f32 to vector<4x16xf32>
    %93 = arith.maximumf %91, %92 : vector<4x16xf32>
    %94 = arith.truncf %93 : vector<4x16xf32> to vector<4x16xbf16>
    %c0_26 = arith.constant 0 : index
    %c163 = arith.constant 163 : index
    %95 = vector.load %arg6[%c0_26, %c163] : memref<4x326xbf16, #tpu.memory_space<vmem>>, vector<4x16xbf16>
    tpu.vector_store %arg6[%c0_26, %c163], %94 {strides = array<i32>} : memref<4x326xbf16, #tpu.memory_space<vmem>>, vector<4x16xbf16>,
    %96 = vector.extract_strided_slice %3 {offsets = [0, 9, 0], sizes = [4, 1, 16], strides = [1, 1, 1]} : vector<4x16x16xf32> to vector<4x1x16xf32>
    %97 = vector.shape_cast %96 : vector<4x1x16xf32> to vector<4x16xf32>
    %98 = vector.broadcast %4 : vector<4x1xf32> to vector<4x16xf32>
    %99 = arith.mulf %97, %98 : vector<4x16xf32>
    %100 = vector.broadcast %5 : vector<4x1xf32> to vector<4x16xf32>
    %101 = arith.addf %99, %100 : vector<4x16xf32>
    %cst_27 = arith.constant 0.000000e+00 : f32
    %102 = vector.broadcast %cst_27 : f32 to vector<4x16xf32>
    %103 = arith.maximumf %101, %102 : vector<4x16xf32>
    %104 = arith.truncf %103 : vector<4x16xf32> to vector<4x16xbf16>
    %c0_28 = arith.constant 0 : index
    %c181 = arith.constant 181 : index
    %105 = vector.load %arg6[%c0_28, %c181] : memref<4x326xbf16, #tpu.memory_space<vmem>>, vector<4x16xbf16>
    tpu.vector_store %arg6[%c0_28, %c181], %104 {strides = array<i32>} : memref<4x326xbf16, #tpu.memory_space<vmem>>, vector<4x16xbf16>,
    %106 = vector.extract_strided_slice %3 {offsets = [0, 10, 0], sizes = [4, 1, 16], strides = [1, 1, 1]} : vector<4x16x16xf32> to vector<4x1x16xf32>
    %107 = vector.shape_cast %106 : vector<4x1x16xf32> to vector<4x16xf32>
    %108 = vector.broadcast %4 : vector<4x1xf32> to vector<4x16xf32>
    %109 = arith.mulf %107, %108 : vector<4x16xf32>
    %110 = vector.broadcast %5 : vector<4x1xf32> to vector<4x16xf32>
    %111 = arith.addf %109, %110 : vector<4x16xf32>
    %cst_29 = arith.constant 0.000000e+00 : f32
    %112 = vector.broadcast %cst_29 : f32 to vector<4x16xf32>
    %113 = arith.maximumf %111, %112 : vector<4x16xf32>
    %114 = arith.truncf %113 : vector<4x16xf32> to vector<4x16xbf16>
    %c0_30 = arith.constant 0 : index
    %c199 = arith.constant 199 : index
    %115 = vector.load %arg6[%c0_30, %c199] : memref<4x326xbf16, #tpu.memory_space<vmem>>, vector<4x16xbf16>
    tpu.vector_store %arg6[%c0_30, %c199], %114 {strides = array<i32>} : memref<4x326xbf16, #tpu.memory_space<vmem>>, vector<4x16xbf16>,
    %116 = vector.extract_strided_slice %3 {offsets = [0, 11, 0], sizes = [4, 1, 16], strides = [1, 1, 1]} : vector<4x16x16xf32> to vector<4x1x16xf32>
    %117 = vector.shape_cast %116 : vector<4x1x16xf32> to vector<4x16xf32>
    %118 = vector.broadcast %4 : vector<4x1xf32> to vector<4x16xf32>
    %119 = arith.mulf %117, %118 : vector<4x16xf32>
    %120 = vector.broadcast %5 : vector<4x1xf32> to vector<4x16xf32>
    %121 = arith.addf %119, %120 : vector<4x16xf32>
    %cst_31 = arith.constant 0.000000e+00 : f32
    %122 = vector.broadcast %cst_31 : f32 to vector<4x16xf32>
    %123 = arith.maximumf %121, %122 : vector<4x16xf32>
    %124 = arith.truncf %123 : vector<4x16xf32> to vector<4x16xbf16>
    %c0_32 = arith.constant 0 : index
    %c217 = arith.constant 217 : index
    %125 = vector.load %arg6[%c0_32, %c217] : memref<4x326xbf16, #tpu.memory_space<vmem>>, vector<4x16xbf16>
    tpu.vector_store %arg6[%c0_32, %c217], %124 {strides = array<i32>} : memref<4x326xbf16, #tpu.memory_space<vmem>>, vector<4x16xbf16>,
    %126 = vector.extract_strided_slice %3 {offsets = [0, 12, 0], sizes = [4, 1, 16], strides = [1, 1, 1]} : vector<4x16x16xf32> to vector<4x1x16xf32>
    %127 = vector.shape_cast %126 : vector<4x1x16xf32> to vector<4x16xf32>
    %128 = vector.broadcast %4 : vector<4x1xf32> to vector<4x16xf32>
    %129 = arith.mulf %127, %128 : vector<4x16xf32>
    %130 = vector.broadcast %5 : vector<4x1xf32> to vector<4x16xf32>
    %131 = arith.addf %129, %130 : vector<4x16xf32>
    %cst_33 = arith.constant 0.000000e+00 : f32
    %132 = vector.broadcast %cst_33 : f32 to vector<4x16xf32>
    %133 = arith.maximumf %131, %132 : vector<4x16xf32>
    %134 = arith.truncf %133 : vector<4x16xf32> to vector<4x16xbf16>
    %c0_34 = arith.constant 0 : index
    %c235 = arith.constant 235 : index
    %135 = vector.load %arg6[%c0_34, %c235] : memref<4x326xbf16, #tpu.memory_space<vmem>>, vector<4x16xbf16>
    tpu.vector_store %arg6[%c0_34, %c235], %134 {strides = array<i32>} : memref<4x326xbf16, #tpu.memory_space<vmem>>, vector<4x16xbf16>,
    %136 = vector.extract_strided_slice %3 {offsets = [0, 13, 0], sizes = [4, 1, 16], strides = [1, 1, 1]} : vector<4x16x16xf32> to vector<4x1x16xf32>
    %137 = vector.shape_cast %136 : vector<4x1x16xf32> to vector<4x16xf32>
    %138 = vector.broadcast %4 : vector<4x1xf32> to vector<4x16xf32>
    %139 = arith.mulf %137, %138 : vector<4x16xf32>
    %140 = vector.broadcast %5 : vector<4x1xf32> to vector<4x16xf32>
    %141 = arith.addf %139, %140 : vector<4x16xf32>
    %cst_35 = arith.constant 0.000000e+00 : f32
    %142 = vector.broadcast %cst_35 : f32 to vector<4x16xf32>
    %143 = arith.maximumf %141, %142 : vector<4x16xf32>
    %144 = arith.truncf %143 : vector<4x16xf32> to vector<4x16xbf16>
    %c0_36 = arith.constant 0 : index
    %c253 = arith.constant 253 : index
    %145 = vector.load %arg6[%c0_36, %c253] : memref<4x326xbf16, #tpu.memory_space<vmem>>, vector<4x16xbf16>
    tpu.vector_store %arg6[%c0_36, %c253], %144 {strides = array<i32>} : memref<4x326xbf16, #tpu.memory_space<vmem>>, vector<4x16xbf16>,
    %146 = vector.extract_strided_slice %3 {offsets = [0, 14, 0], sizes = [4, 1, 16], strides = [1, 1, 1]} : vector<4x16x16xf32> to vector<4x1x16xf32>
    %147 = vector.shape_cast %146 : vector<4x1x16xf32> to vector<4x16xf32>
    %148 = vector.broadcast %4 : vector<4x1xf32> to vector<4x16xf32>
    %149 = arith.mulf %147, %148 : vector<4x16xf32>
    %150 = vector.broadcast %5 : vector<4x1xf32> to vector<4x16xf32>
    %151 = arith.addf %149, %150 : vector<4x16xf32>
    %cst_37 = arith.constant 0.000000e+00 : f32
    %152 = vector.broadcast %cst_37 : f32 to vector<4x16xf32>
    %153 = arith.maximumf %151, %152 : vector<4x16xf32>
    %154 = arith.truncf %153 : vector<4x16xf32> to vector<4x16xbf16>
    %c0_38 = arith.constant 0 : index
    %c271 = arith.constant 271 : index
    %155 = vector.load %arg6[%c0_38, %c271] : memref<4x326xbf16, #tpu.memory_space<vmem>>, vector<4x16xbf16>
    tpu.vector_store %arg6[%c0_38, %c271], %154 {strides = array<i32>} : memref<4x326xbf16, #tpu.memory_space<vmem>>, vector<4x16xbf16>,
    %156 = vector.extract_strided_slice %3 {offsets = [0, 15, 0], sizes = [4, 1, 16], strides = [1, 1, 1]} : vector<4x16x16xf32> to vector<4x1x16xf32>
    %157 = vector.shape_cast %156 : vector<4x1x16xf32> to vector<4x16xf32>
    %158 = vector.broadcast %4 : vector<4x1xf32> to vector<4x16xf32>
    %159 = arith.mulf %157, %158 : vector<4x16xf32>
    %160 = vector.broadcast %5 : vector<4x1xf32> to vector<4x16xf32>
    %161 = arith.addf %159, %160 : vector<4x16xf32>
    %cst_39 = arith.constant 0.000000e+00 : f32
    %162 = vector.broadcast %cst_39 : f32 to vector<4x16xf32>
    %163 = arith.maximumf %161, %162 : vector<4x16xf32>
    %164 = arith.truncf %163 : vector<4x16xf32> to vector<4x16xbf16>
    %c0_40 = arith.constant 0 : index
    %c289 = arith.constant 289 : index
    %165 = vector.load %arg6[%c0_40, %c289] : memref<4x326xbf16, #tpu.memory_space<vmem>>, vector<4x16xbf16>
    tpu.vector_store %arg6[%c0_40, %c289], %164 {strides = array<i32>} : memref<4x326xbf16, #tpu.memory_space<vmem>>, vector<4x16xbf16>,
    %c0_41 = arith.constant 0 : index
    %c0_42 = arith.constant 0 : index
    %166 = vector.load %arg6[%c0_41, %c0_42] : memref<4x326xbf16, #tpu.memory_space<vmem>>, vector<4x288xbf16>
    %c0_43 = arith.constant 0 : index
    %c0_44 = arith.constant 0 : index
    %167 = vector.load %arg7[%c0_43, %c0_44] : memref<36x288xbf16, #tpu.memory_space<vmem>>, vector<4x288xbf16>
    tpu.vector_store %arg7[%c0_43, %c0_44], %166 {strides = array<i32>} : memref<36x288xbf16, #tpu.memory_space<vmem>>, vector<4x288xbf16>,
    %c0_45 = arith.constant 0 : index
    %c1 = arith.constant 1 : index
    %168 = vector.load %arg6[%c0_45, %c1] : memref<4x326xbf16, #tpu.memory_space<vmem>>, vector<4x288xbf16>
    %c4 = arith.constant 4 : index
    %c0_46 = arith.constant 0 : index
    %169 = vector.load %arg7[%c4, %c0_46] : memref<36x288xbf16, #tpu.memory_space<vmem>>, vector<4x288xbf16>
    tpu.vector_store %arg7[%c4, %c0_46], %168 {strides = array<i32>} : memref<36x288xbf16, #tpu.memory_space<vmem>>, vector<4x288xbf16>,
    %c0_47 = arith.constant 0 : index
    %c2 = arith.constant 2 : index
    %170 = vector.load %arg6[%c0_47, %c2] : memref<4x326xbf16, #tpu.memory_space<vmem>>, vector<4x288xbf16>
    %c8 = arith.constant 8 : index
    %c0_48 = arith.constant 0 : index
    %171 = vector.load %arg7[%c8, %c0_48] : memref<36x288xbf16, #tpu.memory_space<vmem>>, vector<4x288xbf16>
    tpu.vector_store %arg7[%c8, %c0_48], %170 {strides = array<i32>} : memref<36x288xbf16, #tpu.memory_space<vmem>>, vector<4x288xbf16>,
    %c0_49 = arith.constant 0 : index
    %c18 = arith.constant 18 : index
    %172 = vector.load %arg6[%c0_49, %c18] : memref<4x326xbf16, #tpu.memory_space<vmem>>, vector<4x288xbf16>
    %c12 = arith.constant 12 : index
    %c0_50 = arith.constant 0 : index
    %173 = vector.load %arg7[%c12, %c0_50] : memref<36x288xbf16, #tpu.memory_space<vmem>>, vector<4x288xbf16>
    tpu.vector_store %arg7[%c12, %c0_50], %172 {strides = array<i32>} : memref<36x288xbf16, #tpu.memory_space<vmem>>, vector<4x288xbf16>,
    %c0_51 = arith.constant 0 : index
    %c19_52 = arith.constant 19 : index
    %174 = vector.load %arg6[%c0_51, %c19_52] : memref<4x326xbf16, #tpu.memory_space<vmem>>, vector<4x288xbf16>
    %c16 = arith.constant 16 : index
    %c0_53 = arith.constant 0 : index
    %175 = vector.load %arg7[%c16, %c0_53] : memref<36x288xbf16, #tpu.memory_space<vmem>>, vector<4x288xbf16>
    tpu.vector_store %arg7[%c16, %c0_53], %174 {strides = array<i32>} : memref<36x288xbf16, #tpu.memory_space<vmem>>, vector<4x288xbf16>,
    %c0_54 = arith.constant 0 : index
    %c20 = arith.constant 20 : index
    %176 = vector.load %arg6[%c0_54, %c20] : memref<4x326xbf16, #tpu.memory_space<vmem>>, vector<4x288xbf16>
    %c20_55 = arith.constant 20 : index
    %c0_56 = arith.constant 0 : index
    %177 = vector.load %arg7[%c20_55, %c0_56] : memref<36x288xbf16, #tpu.memory_space<vmem>>, vector<4x288xbf16>
    tpu.vector_store %arg7[%c20_55, %c0_56], %176 {strides = array<i32>} : memref<36x288xbf16, #tpu.memory_space<vmem>>, vector<4x288xbf16>,
    %c0_57 = arith.constant 0 : index
    %c36 = arith.constant 36 : index
    %178 = vector.load %arg6[%c0_57, %c36] : memref<4x326xbf16, #tpu.memory_space<vmem>>, vector<4x288xbf16>
    %c24 = arith.constant 24 : index
    %c0_58 = arith.constant 0 : index
    %179 = vector.load %arg7[%c24, %c0_58] : memref<36x288xbf16, #tpu.memory_space<vmem>>, vector<4x288xbf16>
    tpu.vector_store %arg7[%c24, %c0_58], %178 {strides = array<i32>} : memref<36x288xbf16, #tpu.memory_space<vmem>>, vector<4x288xbf16>,
    %c0_59 = arith.constant 0 : index
    %c37_60 = arith.constant 37 : index
    %180 = vector.load %arg6[%c0_59, %c37_60] : memref<4x326xbf16, #tpu.memory_space<vmem>>, vector<4x288xbf16>
    %c28 = arith.constant 28 : index
    %c0_61 = arith.constant 0 : index
    %181 = vector.load %arg7[%c28, %c0_61] : memref<36x288xbf16, #tpu.memory_space<vmem>>, vector<4x288xbf16>
    tpu.vector_store %arg7[%c28, %c0_61], %180 {strides = array<i32>} : memref<36x288xbf16, #tpu.memory_space<vmem>>, vector<4x288xbf16>,
    %c0_62 = arith.constant 0 : index
    %c38 = arith.constant 38 : index
    %182 = vector.load %arg6[%c0_62, %c38] : memref<4x326xbf16, #tpu.memory_space<vmem>>, vector<4x288xbf16>
    %c32 = arith.constant 32 : index
    %c0_63 = arith.constant 0 : index
    %183 = vector.load %arg7[%c32, %c0_63] : memref<36x288xbf16, #tpu.memory_space<vmem>>, vector<4x288xbf16>
    tpu.vector_store %arg7[%c32, %c0_63], %182 {strides = array<i32>} : memref<36x288xbf16, #tpu.memory_space<vmem>>, vector<4x288xbf16>,
    %c0_64 = arith.constant 0 : index
    %c0_65 = arith.constant 0 : index
    %184 = vector.load %arg4[%c0_64, %c0_65] : memref<8x36xbf16, #tpu.memory_space<vmem>>, vector<8x36xbf16>
    %c0_66 = arith.constant 0 : index
    %c0_67 = arith.constant 0 : index
    %185 = vector.load %arg7[%c0_66, %c0_67] : memref<36x288xbf16, #tpu.memory_space<vmem>>, vector<36x288xbf16>
    %cst_68 = arith.constant dense<0.000000e+00> : vector<8x288xf32>
    %186 = tpu.matmul %184, %185, %cst_68 {dimension_numbers = #tpu.dot_dimension_numbers<[1], [0], [0], [1], [0, 0, 1, 1], [], []>} : vector<8x36xbf16>, vector<36x288xbf16>, vector<8x288xf32> -> vector<8x288xf32>
    %187 = vector.extract_strided_slice %186 {offsets = [0, 0], sizes = [8, 16], strides = [1, 1]} : vector<8x288xf32> to vector<8x16xf32>
    %c0_69 = arith.constant 0 : index
    %c0_70 = arith.constant 0 : index
    %c0_71 = arith.constant 0 : index
    %188 = vector.load %arg5[%c0_69, %c0_70, %c0_71] : memref<1x8x256xf32, #tpu.memory_space<vmem>>, vector<1x8x16xf32>
    %189 = vector.shape_cast %188 : vector<1x8x16xf32> to vector<8x16xf32>
    %190 = vector.shape_cast %187 : vector<8x16xf32> to vector<1x8x16xf32>
    tpu.vector_store %arg5[%c0_69, %c0_70, %c0_71], %190 {strides = array<i32>} : memref<1x8x256xf32, #tpu.memory_space<vmem>>, vector<1x8x16xf32>,
    %191 = vector.extract_strided_slice %186 {offsets = [0, 18], sizes = [8, 16], strides = [1, 1]} : vector<8x288xf32> to vector<8x16xf32>
    %c0_72 = arith.constant 0 : index
    %c0_73 = arith.constant 0 : index
    %c16_74 = arith.constant 16 : index
    %192 = vector.load %arg5[%c0_72, %c0_73, %c16_74] : memref<1x8x256xf32, #tpu.memory_space<vmem>>, vector<1x8x16xf32>
    %193 = vector.shape_cast %192 : vector<1x8x16xf32> to vector<8x16xf32>
    %194 = vector.shape_cast %191 : vector<8x16xf32> to vector<1x8x16xf32>
    tpu.vector_store %arg5[%c0_72, %c0_73, %c16_74], %194 {strides = array<i32>} : memref<1x8x256xf32, #tpu.memory_space<vmem>>, vector<1x8x16xf32>,
    %195 = vector.extract_strided_slice %186 {offsets = [0, 36], sizes = [8, 16], strides = [1, 1]} : vector<8x288xf32> to vector<8x16xf32>
    %c0_75 = arith.constant 0 : index
    %c0_76 = arith.constant 0 : index
    %c32_77 = arith.constant 32 : index
    %196 = vector.load %arg5[%c0_75, %c0_76, %c32_77] : memref<1x8x256xf32, #tpu.memory_space<vmem>>, vector<1x8x16xf32>
    %197 = vector.shape_cast %196 : vector<1x8x16xf32> to vector<8x16xf32>
    %198 = vector.shape_cast %195 : vector<8x16xf32> to vector<1x8x16xf32>
    tpu.vector_store %arg5[%c0_75, %c0_76, %c32_77], %198 {strides = array<i32>} : memref<1x8x256xf32, #tpu.memory_space<vmem>>, vector<1x8x16xf32>,
    %199 = vector.extract_strided_slice %186 {offsets = [0, 54], sizes = [8, 16], strides = [1, 1]} : vector<8x288xf32> to vector<8x16xf32>
    %c0_78 = arith.constant 0 : index
    %c0_79 = arith.constant 0 : index
    %c48 = arith.constant 48 : index
    %200 = vector.load %arg5[%c0_78, %c0_79, %c48] : memref<1x8x256xf32, #tpu.memory_space<vmem>>, vector<1x8x16xf32>
    %201 = vector.shape_cast %200 : vector<1x8x16xf32> to vector<8x16xf32>
    %202 = vector.shape_cast %199 : vector<8x16xf32> to vector<1x8x16xf32>
    tpu.vector_store %arg5[%c0_78, %c0_79, %c48], %202 {strides = array<i32>} : memref<1x8x256xf32, #tpu.memory_space<vmem>>, vector<1x8x16xf32>,
    %203 = vector.extract_strided_slice %186 {offsets = [0, 72], sizes = [8, 16], strides = [1, 1]} : vector<8x288xf32> to vector<8x16xf32>
    %c0_80 = arith.constant 0 : index
    %c0_81 = arith.constant 0 : index
    %c64 = arith.constant 64 : index
    %204 = vector.load %arg5[%c0_80, %c0_81, %c64] : memref<1x8x256xf32, #tpu.memory_space<vmem>>, vector<1x8x16xf32>
    %205 = vector.shape_cast %204 : vector<1x8x16xf32> to vector<8x16xf32>
    %206 = vector.shape_cast %203 : vector<8x16xf32> to vector<1x8x16xf32>
    tpu.vector_store %arg5[%c0_80, %c0_81, %c64], %206 {strides = array<i32>} : memref<1x8x256xf32, #tpu.memory_space<vmem>>, vector<1x8x16xf32>,
    %207 = vector.extract_strided_slice %186 {offsets = [0, 90], sizes = [8, 16], strides = [1, 1]} : vector<8x288xf32> to vector<8x16xf32>
    %c0_82 = arith.constant 0 : index
    %c0_83 = arith.constant 0 : index
    %c80 = arith.constant 80 : index
    %208 = vector.load %arg5[%c0_82, %c0_83, %c80] : memref<1x8x256xf32, #tpu.memory_space<vmem>>, vector<1x8x16xf32>
    %209 = vector.shape_cast %208 : vector<1x8x16xf32> to vector<8x16xf32>
    %210 = vector.shape_cast %207 : vector<8x16xf32> to vector<1x8x16xf32>
    tpu.vector_store %arg5[%c0_82, %c0_83, %c80], %210 {strides = array<i32>} : memref<1x8x256xf32, #tpu.memory_space<vmem>>, vector<1x8x16xf32>,
    %211 = vector.extract_strided_slice %186 {offsets = [0, 108], sizes = [8, 16], strides = [1, 1]} : vector<8x288xf32> to vector<8x16xf32>
    %c0_84 = arith.constant 0 : index
    %c0_85 = arith.constant 0 : index
    %c96 = arith.constant 96 : index
    %212 = vector.load %arg5[%c0_84, %c0_85, %c96] : memref<1x8x256xf32, #tpu.memory_space<vmem>>, vector<1x8x16xf32>
    %213 = vector.shape_cast %212 : vector<1x8x16xf32> to vector<8x16xf32>
    %214 = vector.shape_cast %211 : vector<8x16xf32> to vector<1x8x16xf32>
    tpu.vector_store %arg5[%c0_84, %c0_85, %c96], %214 {strides = array<i32>} : memref<1x8x256xf32, #tpu.memory_space<vmem>>, vector<1x8x16xf32>,
    %215 = vector.extract_strided_slice %186 {offsets = [0, 126], sizes = [8, 16], strides = [1, 1]} : vector<8x288xf32> to vector<8x16xf32>
    %c0_86 = arith.constant 0 : index
    %c0_87 = arith.constant 0 : index
    %c112 = arith.constant 112 : index
    %216 = vector.load %arg5[%c0_86, %c0_87, %c112] : memref<1x8x256xf32, #tpu.memory_space<vmem>>, vector<1x8x16xf32>
    %217 = vector.shape_cast %216 : vector<1x8x16xf32> to vector<8x16xf32>
    %218 = vector.shape_cast %215 : vector<8x16xf32> to vector<1x8x16xf32>
    tpu.vector_store %arg5[%c0_86, %c0_87, %c112], %218 {strides = array<i32>} : memref<1x8x256xf32, #tpu.memory_space<vmem>>, vector<1x8x16xf32>,
    %219 = vector.extract_strided_slice %186 {offsets = [0, 144], sizes = [8, 16], strides = [1, 1]} : vector<8x288xf32> to vector<8x16xf32>
    %c0_88 = arith.constant 0 : index
    %c0_89 = arith.constant 0 : index
    %c128 = arith.constant 128 : index
    %220 = vector.load %arg5[%c0_88, %c0_89, %c128] : memref<1x8x256xf32, #tpu.memory_space<vmem>>, vector<1x8x16xf32>
    %221 = vector.shape_cast %220 : vector<1x8x16xf32> to vector<8x16xf32>
    %222 = vector.shape_cast %219 : vector<8x16xf32> to vector<1x8x16xf32>
    tpu.vector_store %arg5[%c0_88, %c0_89, %c128], %222 {strides = array<i32>} : memref<1x8x256xf32, #tpu.memory_space<vmem>>, vector<1x8x16xf32>,
    %223 = vector.extract_strided_slice %186 {offsets = [0, 162], sizes = [8, 16], strides = [1, 1]} : vector<8x288xf32> to vector<8x16xf32>
    %c0_90 = arith.constant 0 : index
    %c0_91 = arith.constant 0 : index
    %c144 = arith.constant 144 : index
    %224 = vector.load %arg5[%c0_90, %c0_91, %c144] : memref<1x8x256xf32, #tpu.memory_space<vmem>>, vector<1x8x16xf32>
    %225 = vector.shape_cast %224 : vector<1x8x16xf32> to vector<8x16xf32>
    %226 = vector.shape_cast %223 : vector<8x16xf32> to vector<1x8x16xf32>
    tpu.vector_store %arg5[%c0_90, %c0_91, %c144], %226 {strides = array<i32>} : memref<1x8x256xf32, #tpu.memory_space<vmem>>, vector<1x8x16xf32>,
    %227 = vector.extract_strided_slice %186 {offsets = [0, 180], sizes = [8, 16], strides = [1, 1]} : vector<8x288xf32> to vector<8x16xf32>
    %c0_92 = arith.constant 0 : index
    %c0_93 = arith.constant 0 : index
    %c160 = arith.constant 160 : index
    %228 = vector.load %arg5[%c0_92, %c0_93, %c160] : memref<1x8x256xf32, #tpu.memory_space<vmem>>, vector<1x8x16xf32>
    %229 = vector.shape_cast %228 : vector<1x8x16xf32> to vector<8x16xf32>
    %230 = vector.shape_cast %227 : vector<8x16xf32> to vector<1x8x16xf32>
    tpu.vector_store %arg5[%c0_92, %c0_93, %c160], %230 {strides = array<i32>} : memref<1x8x256xf32, #tpu.memory_space<vmem>>, vector<1x8x16xf32>,
    %231 = vector.extract_strided_slice %186 {offsets = [0, 198], sizes = [8, 16], strides = [1, 1]} : vector<8x288xf32> to vector<8x16xf32>
    %c0_94 = arith.constant 0 : index
    %c0_95 = arith.constant 0 : index
    %c176 = arith.constant 176 : index
    %232 = vector.load %arg5[%c0_94, %c0_95, %c176] : memref<1x8x256xf32, #tpu.memory_space<vmem>>, vector<1x8x16xf32>
    %233 = vector.shape_cast %232 : vector<1x8x16xf32> to vector<8x16xf32>
    %234 = vector.shape_cast %231 : vector<8x16xf32> to vector<1x8x16xf32>
    tpu.vector_store %arg5[%c0_94, %c0_95, %c176], %234 {strides = array<i32>} : memref<1x8x256xf32, #tpu.memory_space<vmem>>, vector<1x8x16xf32>,
    %235 = vector.extract_strided_slice %186 {offsets = [0, 216], sizes = [8, 16], strides = [1, 1]} : vector<8x288xf32> to vector<8x16xf32>
    %c0_96 = arith.constant 0 : index
    %c0_97 = arith.constant 0 : index
    %c192 = arith.constant 192 : index
    %236 = vector.load %arg5[%c0_96, %c0_97, %c192] : memref<1x8x256xf32, #tpu.memory_space<vmem>>, vector<1x8x16xf32>
    %237 = vector.shape_cast %236 : vector<1x8x16xf32> to vector<8x16xf32>
    %238 = vector.shape_cast %235 : vector<8x16xf32> to vector<1x8x16xf32>
    tpu.vector_store %arg5[%c0_96, %c0_97, %c192], %238 {strides = array<i32>} : memref<1x8x256xf32, #tpu.memory_space<vmem>>, vector<1x8x16xf32>,
    %239 = vector.extract_strided_slice %186 {offsets = [0, 234], sizes = [8, 16], strides = [1, 1]} : vector<8x288xf32> to vector<8x16xf32>
    %c0_98 = arith.constant 0 : index
    %c0_99 = arith.constant 0 : index
    %c208 = arith.constant 208 : index
    %240 = vector.load %arg5[%c0_98, %c0_99, %c208] : memref<1x8x256xf32, #tpu.memory_space<vmem>>, vector<1x8x16xf32>
    %241 = vector.shape_cast %240 : vector<1x8x16xf32> to vector<8x16xf32>
    %242 = vector.shape_cast %239 : vector<8x16xf32> to vector<1x8x16xf32>
    tpu.vector_store %arg5[%c0_98, %c0_99, %c208], %242 {strides = array<i32>} : memref<1x8x256xf32, #tpu.memory_space<vmem>>, vector<1x8x16xf32>,
    %243 = vector.extract_strided_slice %186 {offsets = [0, 252], sizes = [8, 16], strides = [1, 1]} : vector<8x288xf32> to vector<8x16xf32>
    %c0_100 = arith.constant 0 : index
    %c0_101 = arith.constant 0 : index
    %c224 = arith.constant 224 : index
    %244 = vector.load %arg5[%c0_100, %c0_101, %c224] : memref<1x8x256xf32, #tpu.memory_space<vmem>>, vector<1x8x16xf32>
    %245 = vector.shape_cast %244 : vector<1x8x16xf32> to vector<8x16xf32>
    %246 = vector.shape_cast %243 : vector<8x16xf32> to vector<1x8x16xf32>
    tpu.vector_store %arg5[%c0_100, %c0_101, %c224], %246 {strides = array<i32>} : memref<1x8x256xf32, #tpu.memory_space<vmem>>, vector<1x8x16xf32>,
    %247 = vector.extract_strided_slice %186 {offsets = [0, 270], sizes = [8, 16], strides = [1, 1]} : vector<8x288xf32> to vector<8x16xf32>
    %c0_102 = arith.constant 0 : index
    %c0_103 = arith.constant 0 : index
    %c240 = arith.constant 240 : index
    %248 = vector.load %arg5[%c0_102, %c0_103, %c240] : memref<1x8x256xf32, #tpu.memory_space<vmem>>, vector<1x8x16xf32>
    %249 = vector.shape_cast %248 : vector<1x8x16xf32> to vector<8x16xf32>
    %250 = vector.shape_cast %247 : vector<8x16xf32> to vector<1x8x16xf32>
    tpu.vector_store %arg5[%c0_102, %c0_103, %c240], %250 {strides = array<i32>} : memref<1x8x256xf32, #tpu.memory_space<vmem>>, vector<1x8x16xf32>,
    return
  }
  func.func @transform_0(%arg0: i32) -> (i32, i32, i32, i32) {
    %c0_i32 = arith.constant 0 : i32
    %c0_i32_0 = arith.constant 0 : i32
    %c0_i32_1 = arith.constant 0 : i32
    %c0_i32_2 = arith.constant 0 : i32
    return %arg0, %c0_i32, %c0_i32_0, %c0_i32_1 : i32, i32, i32, i32
  }
  func.func @transform_1(%arg0: i32) -> (i32, i32) {
    %c0_i32 = arith.constant 0 : i32
    %c0_i32_0 = arith.constant 0 : i32
    %c0_i32_1 = arith.constant 0 : i32
    return %c0_i32, %c0_i32_0 : i32, i32
  }
  func.func @transform_2(%arg0: i32) -> (i32, i32) {
    %c0_i32 = arith.constant 0 : i32
    %c0_i32_0 = arith.constant 0 : i32
    %c0_i32_1 = arith.constant 0 : i32
    return %c0_i32, %c0_i32_0 : i32, i32
  }
  func.func @transform_3(%arg0: i32) -> (i32, i32) {
    %c0_i32 = arith.constant 0 : i32
    %c0_i32_0 = arith.constant 0 : i32
    %c0_i32_1 = arith.constant 0 : i32
    return %c0_i32, %c0_i32_0 : i32, i32
  }
  func.func @transform_4(%arg0: i32) -> (i32, i32, i32) {
    %c0_i32 = arith.constant 0 : i32
    %c0_i32_0 = arith.constant 0 : i32
    %c0_i32_1 = arith.constant 0 : i32
    return %arg0, %c0_i32, %c0_i32_0 : i32, i32, i32
  }
}

</mosaic_0001>

<llo_original>
// kernel: iconv2d_forward.1
$region0: #{iconv2d_forward.1}
  #allocation0 [shape = 'u32[]', space=smem, size = 0x4, offset = 0x4, fixed_abs, tag = 'smem constant byte address 0x4 - core index']
  #allocation1 [shape = 'u32[144,128]{1,0:T(1,128)}', space=vmem, size = 0x12000, scoped, tag = 'internal scratch']
  #allocation2 [shape = 'bf16[4,326]{1,0:T(4,128)(2,1)}', space=vmem, size = 0xc00, scoped, tag = 'scratch operand']
  #allocation3 [shape = 'bf16[36,288]{1,0:T(8,128)(2,1)}', space=vmem, size = 0x7800, scoped, tag = 'scratch operand']
  %s0 = inlined_call_operand.vmem [shape: f32[2,4,16,16], index: 0, kind: input, shape index: {}]
  %s1 = inlined_call_operand.vmem [shape: f32[4,1], index: 1, kind: input, shape index: {}]
  %s2 = inlined_call_operand.vmem [shape: f32[4,1], index: 2, kind: input, shape index: {}]
  %s3 = inlined_call_operand.vmem [shape: bf16[8,36], index: 3, kind: input, shape index: {}]
  %s4 = inlined_call_operand.vmem [shape: f32[2,8,256], index: 4, kind: output, shape index: {}]
  %s5 = sld [smem:[#allocation0]]
  $region49: #{iconv2d_forward.1} parent=0
    _
  %s7 = ssub.s32 1, %s5
  %s8 = scalar_select 0, %s7, %s5
  loop: start=0, step=1, limit=4
  $region2: #{iconv2d_forward.1} parent=0 // loop_pre_header
    _
  $region3: #{iconv2d_forward.1} parent=0 // loop_header
    %s10 = sphi 0, %s14
    %p11 = scmp.ge.s32.totalorder %s10, 4
    %s20 = sphi 0, %s22
    %s23 = sphi 0, %s20
    %s24 = sphi 0, %s23
    %s40 = sphi 0, %s24
    %s44 = sphi 0, %s44
    %s46 = sphi 0, %s44
    %s47 = sphi 0, %s46
    %s61 = sphi 0, %s47
    %s65 = sphi 0, %s65
    %s67 = sphi 0, %s65
    %s68 = sphi 0, %s67
    %s82 = sphi 0, %s68
    %s86 = sphi 0, %s86
    %s88 = sphi 0, %s86
    %s89 = sphi 0, %s88
    %s103 = sphi 0, %s89
    %s109 = sphi 0, %s111
    %s112 = sphi 0, %s109
    %s113 = sphi 0, %s112
    %s129 = sphi 0, %s113
  $region4: #{iconv2d_forward.1} parent=0 // loop_header_branch
    %13 = sbr.rel (%p11) target = $region8
  $region5: #{iconv2d_forward.1} parent=0 // loop_body
    %s15 = ssub.s32 %s10, 1
    %s16 = ssub.s32 %s10, 2
    %s17 = sadd.s32 %s10, 1
    %s18 = ssub.s32 %s10, %s17
    %p19 = scmp.eq.s32.totalorder %s18, 0
    %s21 = sadd.s32 %s20, 1
    %s22 = scalar_select %p19, %s20, %s21
    %p25 = pneg %p19
    %p26 = scmp.eq.s32.totalorder %s10, 1
    %p27 = por %p25, %p26
    %p28 = scmp.ne.s32.totalorder %s20, %s23
    %p29 = scmp.eq.s32.totalorder %s10, 0
    %p30 = por %p28, %p29
    %p31 = scmp.ne.s32.totalorder %s20, %s23
    %p32 = scmp.eq.s32.totalorder %s15, 1
    %p33 = por %p31, %p32
    %p34 = scmp.ne.s32.totalorder %s23, %s24
    %p35 = scmp.eq.s32.totalorder %s15, 0
    %p36 = por %p34, %p35
    %p37 = scmp.ne.s32.totalorder %s23, %s24
    %p38 = scmp.eq.s32.totalorder %s16, 1
    %p39 = por %p37, %p38
    %p41 = scmp.ne.s32.totalorder %s24, %s40
    %p42 = scmp.eq.s32.totalorder %s16, 0
    %p43 = por %p41, %p42
    %s45 = sadd.s32 %s44, 1
    %p48 = scmp.eq.s32.totalorder %s10, 1
    %p49 = scmp.ne.s32.totalorder %s44, %s46
    %p50 = scmp.eq.s32.totalorder %s10, 0
    %p51 = por %p49, %p50
    %p52 = scmp.ne.s32.totalorder %s44, %s46
    %p53 = scmp.eq.s32.totalorder %s15, 1
    %p54 = por %p52, %p53
    %p55 = scmp.ne.s32.totalorder %s46, %s47
    %p56 = scmp.eq.s32.totalorder %s15, 0
    %p57 = por %p55, %p56
    %p58 = scmp.ne.s32.totalorder %s46, %s47
    %p59 = scmp.eq.s32.totalorder %s16, 1
    %p60 = por %p58, %p59
    %p62 = scmp.ne.s32.totalorder %s47, %s61
    %p63 = scmp.eq.s32.totalorder %s16, 0
    %p64 = por %p62, %p63
    %s66 = sadd.s32 %s65, 1
    %p69 = scmp.eq.s32.totalorder %s10, 1
    %p70 = scmp.ne.s32.totalorder %s65, %s67
    %p71 = scmp.eq.s32.totalorder %s10, 0
    %p72 = por %p70, %p71
    %p73 = scmp.ne.s32.totalorder %s65, %s67
    %p74 = scmp.eq.s32.totalorder %s15, 1
    %p75 = por %p73, %p74
    %p76 = scmp.ne.s32.totalorder %s67, %s68
    %p77 = scmp.eq.s32.totalorder %s15, 0
    %p78 = por %p76, %p77
    %p79 = scmp.ne.s32.totalorder %s67, %s68
    %p80 = scmp.eq.s32.totalorder %s16, 1
    %p81 = por %p79, %p80
    %p83 = scmp.ne.s32.totalorder %s68, %s82
    %p84 = scmp.eq.s32.totalorder %s16, 0
    %p85 = por %p83, %p84
    %s87 = sadd.s32 %s86, 1
    %p90 = scmp.eq.s32.totalorder %s10, 1
    %p91 = scmp.ne.s32.totalorder %s86, %s88
    %p92 = scmp.eq.s32.totalorder %s10, 0
    %p93 = por %p91, %p92
    %p94 = scmp.ne.s32.totalorder %s86, %s88
    %p95 = scmp.eq.s32.totalorder %s15, 1
    %p96 = por %p94, %p95
    %p97 = scmp.ne.s32.totalorder %s88, %s89
    %p98 = scmp.eq.s32.totalorder %s15, 0
    %p99 = por %p97, %p98
    %p100 = scmp.ne.s32.totalorder %s88, %s89
    %p101 = scmp.eq.s32.totalorder %s16, 1
    %p102 = por %p100, %p101
    %p104 = scmp.ne.s32.totalorder %s89, %s103
    %p105 = scmp.eq.s32.totalorder %s16, 0
    %p106 = por %p104, %p105
    %s107 = ssub.s32 %s10, %s17
    %p108 = scmp.eq.s32.totalorder %s107, 0
    %s110 = sadd.s32 %s109, 1
    %s111 = scalar_select %p108, %s109, %s110
    %p114 = pneg %p108
    %p115 = scmp.eq.s32.totalorder %s10, 1
    %p116 = por %p114, %p115
    %p117 = scmp.ne.s32.totalorder %s109, %s112
    %p118 = scmp.eq.s32.totalorder %s10, 0
    %p119 = por %p117, %p118
    %p120 = scmp.ne.s32.totalorder %s109, %s112
    %p121 = scmp.eq.s32.totalorder %s15, 1
    %p122 = por %p120, %p121
    %p123 = scmp.ne.s32.totalorder %s112, %s113
    %p124 = scmp.eq.s32.totalorder %s15, 0
    %p125 = por %p123, %p124
    %p126 = scmp.ne.s32.totalorder %s112, %s113
    %p127 = scmp.eq.s32.totalorder %s16, 1
    %p128 = por %p126, %p127
    %p130 = scmp.ne.s32.totalorder %s113, %s129
    %p131 = scmp.eq.s32.totalorder %s16, 0
    %p132 = por %p130, %p131
    %p133 = scmp.le.s32.totalorder 1, %s10
    %p134 = scmp.lt.s32.totalorder %s10, 3
    %p135 = pnand %p133, %p134
    %p136 = pneg %p135
    // Predicated region
    $region9: #{iconv2d_forward.1} parent=5 // pred_check
      _
    $region10: #{iconv2d_forward.1} parent=5 // pred_check_branch
      %138 = sbr.rel (%p135) target = $region12
    $region11: #{iconv2d_forward.1} parent=5 // pred_region
      %s139 = ssub.s32 %s10, 1
      // Predicated region
      $region13: #{iconv2d_forward.1} parent=11 // pred_check
        %p140 = pneg %p57
      $region14: #{iconv2d_forward.1} parent=11 // pred_check_branch
        %142 = sbr.rel (%p140) target = $region16
      $region15: #{iconv2d_forward.1} parent=11 // pred_region
        _
      $region16: #{iconv2d_forward.1} parent=11 // pred_fallthru
        _
      // Predicated region
      $region17: #{iconv2d_forward.1} parent=11 // pred_check
        %p143 = pneg %p78
      $region18: #{iconv2d_forward.1} parent=11 // pred_check_branch
        %145 = sbr.rel (%p143) target = $region20
      $region19: #{iconv2d_forward.1} parent=11 // pred_region
        _
      $region20: #{iconv2d_forward.1} parent=11 // pred_fallthru
        _
      // Predicated region
      $region21: #{iconv2d_forward.1} parent=11 // pred_check
        %p146 = pneg %p99
      $region22: #{iconv2d_forward.1} parent=11 // pred_check_branch
        %148 = sbr.rel (%p146) target = $region24
      $region23: #{iconv2d_forward.1} parent=11 // pred_region
        _
      $region24: #{iconv2d_forward.1} parent=11 // pred_fallthru
        _
    $region12: #{iconv2d_forward.1} parent=5 // pred_fallthru
      _
    %p149 = scmp.lt.s32.totalorder %s10, 2
    // Predicated region
    $region25: #{iconv2d_forward.1} parent=5 // pred_check
      %p150 = pneg %p149
    $region26: #{iconv2d_forward.1} parent=5 // pred_check_branch
      %152 = sbr.rel (%p150) target = $region28
    $region27: #{iconv2d_forward.1} parent=5 // pred_region
      // Predicated region
      $region29: #{iconv2d_forward.1} parent=27 // pred_check
        %p153 = pneg %p30
      $region30: #{iconv2d_forward.1} parent=27 // pred_check_branch
        %155 = sbr.rel (%p153) target = $region32
      $region31: #{iconv2d_forward.1} parent=27 // pred_region
        %p156 = scmp.lt.s32.totalorder %s10, 1
        %s157 = scalar_select %p156, %s10, 1
        %s158 = smul.addr %s157, 8
        %s159 = smul.addr %s158, 8
        %s160 = scalar_lea.vmem %s0, %s159
      $region32: #{iconv2d_forward.1} parent=27 // pred_fallthru
        _
    $region28: #{iconv2d_forward.1} parent=5 // pred_fallthru
      _
    %p161 = scmp.le.s32.totalorder 1, %s10
    %p162 = scmp.lt.s32.totalorder %s10, 3
    %p163 = pnand %p161, %p162
    %p164 = pneg %p163
    // Predicated region
    $region33: #{iconv2d_forward.1} parent=5 // pred_check
      _
    $region34: #{iconv2d_forward.1} parent=5 // pred_check_branch
      %166 = sbr.rel (%p163) target = $region36
    $region35: #{iconv2d_forward.1} parent=5 // pred_region
      %s167 = ssub.s32 %s10, 1
      %p168 = scmp.lt.s32.totalorder %s15, 1
      %s169 = scalar_select %p168, %s15, 1
      %s170 = smul.addr %s169, 8
      %s171 = smul.addr %s170, 8
      %s172 = scalar_lea.vmem %s0, %s171
      %p173 = pneg %p36
      %p174 = pneg %p33
      %p175 = pneg %p57
      %p176 = pneg %p54
      %p177 = pneg %p78
      %p178 = pneg %p75
      %p179 = pneg %p99
      %p180 = pneg %p96
      %p181 = pneg %p125
      %p182 = pneg %p122
      %p183 = scmp.lt.s32.totalorder %s15, 1
      %s184 = scalar_select %p183, %s15, 1
      %s185 = smul.addr %s184, 2
      %s186 = smul.addr %s185, 8
      %s187 = scalar_lea.vmem %s4, %s186
      %p188 = scmp.lt.s32.totalorder %s15, 1
      %s189 = scalar_select %p188, %s15, 1
      %s190 = smul.addr %s189, 8
      %s191 = smul.addr %s190, 8
      %s192 = scalar_lea.vmem %s0, %s191
      %p193 = scmp.lt.s32.totalorder %s15, 1
      %s194 = scalar_select %p193, %s15, 1
      %s195 = smul.addr %s194, 2
      %s196 = smul.addr %s195, 8
      %s197 = scalar_lea.vmem %s4, %s196
      %vm199 = vcmask 1041408
      %vm200 = vcmask 1043458
      %vm201 = vmor %vm200, %vm199
      %vm202 = vcmask 570372
      %vm203 = vmor %vm202, %vm201
      %204 = vst.msk [vmem:[#allocation2] sm:$0x3f] %vm203, 0
      %v205 = vld [vmem:[%s192] sm:$0xff]
      %v206 = vld [vmem:[%s192 + $0x8] sm:$0xff]
      %v207 = vld [vmem:[%s192 + $0x10] sm:$0xff]
      %v208 = vld [vmem:[%s192 + $0x18] sm:$0xff]
      %v209 = vld [vmem:[%s192 + $0x20] sm:$0xff]
      %v210 = vld [vmem:[%s192 + $0x28] sm:$0xff]
      %v211 = vld [vmem:[%s192 + $0x30] sm:$0xff]
      %v212 = vld [vmem:[%s192 + $0x38] sm:$0xff]
      %v213 = vld [vmem:[%s1] sm:$0xf]
      %v214 = vld [vmem:[%s2] sm:$0xf]
      %216 = vset.pattern.permute.xlu0 0
      %217 = vperm.xlu0 %216, %v213
      %v218 = vpop.permute.xlu0 %217
      %v219 = vrot.slane %v218, 1
      %v220 = vrot.slane %v218, 2
      %v221 = vrot.slane %v218, 3
      %v226 = vmul.f32 %v205, %v218
      %v227 = vmul.f32 %v207, %v219
      %v228 = vmul.f32 %v209, %v220
      %v229 = vmul.f32 %v211, %v221
      %231 = vset.pattern.permute.xlu0 0
      %232 = vperm.xlu0 %231, %v214
      %v233 = vpop.permute.xlu0 %232
      %v234 = vrot.slane %v233, 1
      %v235 = vrot.slane %v233, 2
      %v236 = vrot.slane %v233, 3
      %v241 = vadd.f32 %v226, %v233
      %v242 = vadd.f32 %v227, %v234
      %v243 = vadd.f32 %v228, %v235
      %v244 = vadd.f32 %v229, %v236
      %v245 = vmax.f32 %v241, 0.0
      %v246 = vmax.f32 %v242, 0.0
      %v247 = vmax.f32 %v243, 0.0
      %v248 = vmax.f32 %v244, 0.0
      %v249 = vpack.c.bf16 %v245, %v245
      %v250 = vpack.c.bf16 %v246, %v246
      %v251 = vpack.c.bf16 %v247, %v247
      %v252 = vpack.c.bf16 %v248, %v248
      %v258 = vunpack.c.l.s4 1983009808
      %v259 = vunpack.c.0.s8 %v258
      %v260 = vlaneseq
      %v261 = vshrl.u32 %v260, 7
      %v262 = vsub.s32 %v259, %v261
      %v263 = vrot.slane %v249, %v262
      %v265 = vunpack.c.l.s4 1983009808
      %v266 = vunpack.c.0.s8 %v265
      %v267 = vlaneseq
      %v268 = vshrl.u32 %v267, 7
      %v269 = vsub.s32 %v266, %v268
      %v270 = vrot.slane %v250, %v269
      %v272 = vunpack.c.l.s4 1983009808
      %v273 = vunpack.c.0.s8 %v272
      %v274 = vlaneseq
      %v275 = vshrl.u32 %v274, 7
      %v276 = vsub.s32 %v273, %v275
      %v277 = vrot.slane %v251, %v276
      %v279 = vunpack.c.l.s4 1983009808
      %v280 = vunpack.c.0.s8 %v279
      %v281 = vlaneseq
      %v282 = vshrl.u32 %v281, 7
      %v283 = vsub.s32 %v280, %v282
      %v284 = vrot.slane %v252, %v283
      %v286 = vunpack.c.l.s4 1983009808
      %v287 = vunpack.c.0.s8 %v286
      %v288 = vlaneseq
      %v289 = vshrl.u32 %v288, 7
      %v290 = vsub.s32 %v287, %v289
      %v291 = vrot.slane %v263, %v290
      %v293 = vunpack.c.l.s4 1983009808
      %v294 = vunpack.c.0.s8 %v293
      %v295 = vlaneseq
      %v296 = vshrl.u32 %v295, 7
      %v297 = vsub.s32 %v294, %v296
      %v298 = vrot.slane %v270, %v297
      %v300 = vunpack.c.l.s4 1983009808
      %v301 = vunpack.c.0.s8 %v300
      %v302 = vlaneseq
      %v303 = vshrl.u32 %v302, 7
      %v304 = vsub.s32 %v301, %v303
      %v305 = vrot.slane %v277, %v304
      %v307 = vunpack.c.l.s4 1983009808
      %v308 = vunpack.c.0.s8 %v307
      %v309 = vlaneseq
      %v310 = vshrl.u32 %v309, 7
      %v311 = vsub.s32 %v308, %v310
      %v312 = vrot.slane %v284, %v311
      %v313 = vunpack.c.l.b16 %v291
      %v314 = vunpack.c.l.b16 %v298
      %v315 = vunpack.c.l.b16 %v305
      %v316 = vunpack.c.l.b16 %v312
      %v317 = vrot.slane %v314, 7
      %vm318 = vcmask 1041409
      %v319 = vsel %vm318, %v317, %v313
      %v320 = vrot.slane %v315, 6
      %vm321 = vcmask 1042434
      %v322 = vsel %vm321, %v320, %v319
      %v323 = vrot.slane %v316, 5
      %vm324 = vcmask 1043459
      %v325 = vsel %vm324, %v323, %v322
      %v326 = vpack.c.b16 %v325, %v325
      %v328 = vunpack.c.l.s4 1983009808
      %v329 = vunpack.c.0.s8 %v328
      %v330 = vlaneseq
      %v331 = vshrl.u32 %v330, 7
      %v332 = vsub.s32 %v329, %v331
      %v333 = vrot.slane %v326, %v332
      %334 = vrot.lane.b32.xlu0 %v333, 19
      %v335 = vpop.permute.xlu0 %334
      %vm337 = vcmask 279704
      %338 = vst.msk [vmem:[#allocation2] sm:$0x3] %vm337, %v335
      %v339 = vrot.slane %v218, 7
      %v341 = vmul.f32 %v205, %v339
      %v342 = vmul.f32 %v207, %v218
      %v343 = vmul.f32 %v209, %v219
      %v344 = vmul.f32 %v211, %v220
      %v345 = vrot.slane %v233, 7
      %v347 = vadd.f32 %v341, %v345
      %v348 = vadd.f32 %v342, %v233
      %v349 = vadd.f32 %v343, %v234
      %v350 = vadd.f32 %v344, %v235
      %v351 = vmax.f32 %v347, 0.0
      %v352 = vmax.f32 %v348, 0.0
      %v353 = vmax.f32 %v349, 0.0
      %v354 = vmax.f32 %v350, 0.0
      %v355 = vpack.c.bf16 %v351, %v351
      %v356 = vpack.c.bf16 %v352, %v352
      %v357 = vpack.c.bf16 %v353, %v353
      %v358 = vpack.c.bf16 %v354, %v354
      %v364 = vunpack.c.l.s4 1983009808
      %v365 = vunpack.c.0.s8 %v364
      %v366 = vlaneseq
      %v367 = vshrl.u32 %v366, 7
      %v368 = vsub.s32 %v365, %v367
      %v369 = vrot.slane %v355, %v368
      %v371 = vunpack.c.l.s4 1983009808
      %v372 = vunpack.c.0.s8 %v371
      %v373 = vlaneseq
      %v374 = vshrl.u32 %v373, 7
      %v375 = vsub.s32 %v372, %v374
      %v376 = vrot.slane %v356, %v375
      %v378 = vunpack.c.l.s4 1983009808
      %v379 = vunpack.c.0.s8 %v378
      %v380 = vlaneseq
      %v381 = vshrl.u32 %v380, 7
      %v382 = vsub.s32 %v379, %v381
      %v383 = vrot.slane %v357, %v382
      %v385 = vunpack.c.l.s4 1983009808
      %v386 = vunpack.c.0.s8 %v385
      %v387 = vlaneseq
      %v388 = vshrl.u32 %v387, 7
      %v389 = vsub.s32 %v386, %v388
      %v390 = vrot.slane %v358, %v389
      %v392 = vunpack.c.l.s4 1983009808
      %v393 = vunpack.c.0.s8 %v392
      %v394 = vlaneseq
      %v395 = vshrl.u32 %v394, 7
      %v396 = vsub.s32 %v393, %v395
      %v397 = vrot.slane %v369, %v396
      %v399 = vunpack.c.l.s4 1983009808
      %v400 = vunpack.c.0.s8 %v399
      %v401 = vlaneseq
      %v402 = vshrl.u32 %v401, 7
      %v403 = vsub.s32 %v400, %v402
      %v404 = vrot.slane %v376, %v403
      %v406 = vunpack.c.l.s4 1983009808
      %v407 = vunpack.c.0.s8 %v406
      %v408 = vlaneseq
      %v409 = vshrl.u32 %v408, 7
      %v410 = vsub.s32 %v407, %v409
      %v411 = vrot.slane %v383, %v410
      %v413 = vunpack.c.l.s4 1983009808
      %v414 = vunpack.c.0.s8 %v413
      %v415 = vlaneseq
      %v416 = vshrl.u32 %v415, 7
      %v417 = vsub.s32 %v414, %v416
      %v418 = vrot.slane %v390, %v417
      %v419 = vunpack.c.l.b16 %v397
      %v420 = vunpack.c.l.b16 %v404
      %v421 = vunpack.c.l.b16 %v411
      %v422 = vunpack.c.l.b16 %v418
      %v423 = vrot.slane %v419, 1
      %v424 = vsel %vm318, %v420, %v423
      %v425 = vrot.slane %v421, 7
      %v426 = vsel %vm321, %v425, %v424
      %v427 = vrot.slane %v422, 6
      %v428 = vsel %vm324, %v427, %v426
      %v429 = vpack.c.b16 %v428, %v428
      %v431 = vunpack.c.l.s4 1983009808
      %v432 = vunpack.c.0.s8 %v431
      %v433 = vlaneseq
      %v434 = vshrl.u32 %v433, 7
      %v435 = vsub.s32 %v432, %v434
      %v436 = vrot.slane %v429, %v435
      %437 = vrot.lane.b32.xlu0 %v436, 37
      %v438 = vpop.permute.xlu0 %437
      %vm440 = vcmask 427304
      %441 = vst.msk [vmem:[#allocation2] sm:$0x3] %vm440, %v438
      %v442 = vrot.slane %v218, 6
      %v444 = vmul.f32 %v205, %v442
      %v445 = vmul.f32 %v207, %v339
      %v446 = vmul.f32 %v209, %v218
      %v447 = vmul.f32 %v211, %v219
      %v448 = vrot.slane %v233, 6
      %v450 = vadd.f32 %v444, %v448
      %v451 = vadd.f32 %v445, %v345
      %v452 = vadd.f32 %v446, %v233
      %v453 = vadd.f32 %v447, %v234
      %v454 = vmax.f32 %v450, 0.0
      %v455 = vmax.f32 %v451, 0.0
      %v456 = vmax.f32 %v452, 0.0
      %v457 = vmax.f32 %v453, 0.0
      %v458 = vpack.c.bf16 %v454, %v454
      %v459 = vpack.c.bf16 %v455, %v455
      %v460 = vpack.c.bf16 %v456, %v456
      %v461 = vpack.c.bf16 %v457, %v457
      %v467 = vunpack.c.l.s4 1983009808
      %v468 = vunpack.c.0.s8 %v467
      %v469 = vlaneseq
      %v470 = vshrl.u32 %v469, 7
      %v471 = vsub.s32 %v468, %v470
      %v472 = vrot.slane %v458, %v471
      %v474 = vunpack.c.l.s4 1983009808
      %v475 = vunpack.c.0.s8 %v474
      %v476 = vlaneseq
      %v477 = vshrl.u32 %v476, 7
      %v478 = vsub.s32 %v475, %v477
      %v479 = vrot.slane %v459, %v478
      %v481 = vunpack.c.l.s4 1983009808
      %v482 = vunpack.c.0.s8 %v481
      %v483 = vlaneseq
      %v484 = vshrl.u32 %v483, 7
      %v485 = vsub.s32 %v482, %v484
      %v486 = vrot.slane %v460, %v485
      %v488 = vunpack.c.l.s4 1983009808
      %v489 = vunpack.c.0.s8 %v488
      %v490 = vlaneseq
      %v491 = vshrl.u32 %v490, 7
      %v492 = vsub.s32 %v489, %v491
      %v493 = vrot.slane %v461, %v492
      %v495 = vunpack.c.l.s4 1983009808
      %v496 = vunpack.c.0.s8 %v495
      %v497 = vlaneseq
      %v498 = vshrl.u32 %v497, 7
      %v499 = vsub.s32 %v496, %v498
      %v500 = vrot.slane %v472, %v499
      %v502 = vunpack.c.l.s4 1983009808
      %v503 = vunpack.c.0.s8 %v502
      %v504 = vlaneseq
      %v505 = vshrl.u32 %v504, 7
      %v506 = vsub.s32 %v503, %v505
      %v507 = vrot.slane %v479, %v506
      %v509 = vunpack.c.l.s4 1983009808
      %v510 = vunpack.c.0.s8 %v509
      %v511 = vlaneseq
      %v512 = vshrl.u32 %v511, 7
      %v513 = vsub.s32 %v510, %v512
      %v514 = vrot.slane %v486, %v513
      %v516 = vunpack.c.l.s4 1983009808
      %v517 = vunpack.c.0.s8 %v516
      %v518 = vlaneseq
      %v519 = vshrl.u32 %v518, 7
      %v520 = vsub.s32 %v517, %v519
      %v521 = vrot.slane %v493, %v520
      %v522 = vunpack.c.l.b16 %v500
      %v523 = vunpack.c.l.b16 %v507
      %v524 = vunpack.c.l.b16 %v514
      %v525 = vunpack.c.l.b16 %v521
      %v526 = vrot.slane %v522, 2
      %v527 = vrot.slane %v523, 1
      %v528 = vsel %vm318, %v527, %v526
      %v529 = vsel %vm321, %v524, %v528
      %v530 = vrot.slane %v525, 7
      %v531 = vsel %vm324, %v530, %v529
      %v532 = vpack.c.b16 %v531, %v531
      %v534 = vunpack.c.l.s4 1983009808
      %v535 = vunpack.c.0.s8 %v534
      %v536 = vlaneseq
      %v537 = vshrl.u32 %v536, 7
      %v538 = vsub.s32 %v535, %v537
      %v539 = vrot.slane %v532, %v538
      %540 = vrot.lane.b32.xlu0 %v539, 55
      %v541 = vpop.permute.xlu0 %540
      %vm543 = vcmask 574904
      %544 = vst.msk [vmem:[#allocation2] sm:$0x3] %vm543, %v541
      %v545 = vrot.slane %v218, 5
      %v547 = vmul.f32 %v205, %v545
      %v548 = vmul.f32 %v207, %v442
      %v549 = vmul.f32 %v209, %v339
      %v550 = vmul.f32 %v211, %v218
      %v551 = vrot.slane %v233, 5
      %v553 = vadd.f32 %v547, %v551
      %v554 = vadd.f32 %v548, %v448
      %v555 = vadd.f32 %v549, %v345
      %v556 = vadd.f32 %v550, %v233
      %v557 = vmax.f32 %v553, 0.0
      %v558 = vmax.f32 %v554, 0.0
      %v559 = vmax.f32 %v555, 0.0
      %v560 = vmax.f32 %v556, 0.0
      %v561 = vpack.c.bf16 %v557, %v557
      %v562 = vpack.c.bf16 %v558, %v558
      %v563 = vpack.c.bf16 %v559, %v559
      %v564 = vpack.c.bf16 %v560, %v560
      %v570 = vunpack.c.l.s4 1983009808
      %v571 = vunpack.c.0.s8 %v570
      %v572 = vlaneseq
      %v573 = vshrl.u32 %v572, 7
      %v574 = vsub.s32 %v571, %v573
      %v575 = vrot.slane %v561, %v574
      %v577 = vunpack.c.l.s4 1983009808
      %v578 = vunpack.c.0.s8 %v577
      %v579 = vlaneseq
      %v580 = vshrl.u32 %v579, 7
      %v581 = vsub.s32 %v578, %v580
      %v582 = vrot.slane %v562, %v581
      %v584 = vunpack.c.l.s4 1983009808
      %v585 = vunpack.c.0.s8 %v584
      %v586 = vlaneseq
      %v587 = vshrl.u32 %v586, 7
      %v588 = vsub.s32 %v585, %v587
      %v589 = vrot.slane %v563, %v588
      %v591 = vunpack.c.l.s4 1983009808
      %v592 = vunpack.c.0.s8 %v591
      %v593 = vlaneseq
      %v594 = vshrl.u32 %v593, 7
      %v595 = vsub.s32 %v592, %v594
      %v596 = vrot.slane %v564, %v595
      %v598 = vunpack.c.l.s4 1983009808
      %v599 = vunpack.c.0.s8 %v598
      %v600 = vlaneseq
      %v601 = vshrl.u32 %v600, 7
      %v602 = vsub.s32 %v599, %v601
      %v603 = vrot.slane %v575, %v602
      %v605 = vunpack.c.l.s4 1983009808
      %v606 = vunpack.c.0.s8 %v605
      %v607 = vlaneseq
      %v608 = vshrl.u32 %v607, 7
      %v609 = vsub.s32 %v606, %v608
      %v610 = vrot.slane %v582, %v609
      %v612 = vunpack.c.l.s4 1983009808
      %v613 = vunpack.c.0.s8 %v612
      %v614 = vlaneseq
      %v615 = vshrl.u32 %v614, 7
      %v616 = vsub.s32 %v613, %v615
      %v617 = vrot.slane %v589, %v616
      %v619 = vunpack.c.l.s4 1983009808
      %v620 = vunpack.c.0.s8 %v619
      %v621 = vlaneseq
      %v622 = vshrl.u32 %v621, 7
      %v623 = vsub.s32 %v620, %v622
      %v624 = vrot.slane %v596, %v623
      %v625 = vunpack.c.l.b16 %v603
      %v626 = vunpack.c.l.b16 %v610
      %v627 = vunpack.c.l.b16 %v617
      %v628 = vunpack.c.l.b16 %v624
      %v629 = vrot.slane %v625, 3
      %v630 = vrot.slane %v626, 2
      %v631 = vsel %vm318, %v630, %v629
      %v632 = vrot.slane %v627, 1
      %v633 = vsel %vm321, %v632, %v631
      %v634 = vsel %vm324, %v628, %v633
      %v635 = vpack.c.b16 %v634, %v634
      %v637 = vunpack.c.l.s4 1983009808
      %v638 = vunpack.c.0.s8 %v637
      %v639 = vlaneseq
      %v640 = vshrl.u32 %v639, 7
      %v641 = vsub.s32 %v638, %v640
      %v642 = vrot.slane %v635, %v641
      %643 = vrot.lane.b32.xlu0 %v642, 73
      %v644 = vpop.permute.xlu0 %643
      %vm646 = vcmask 722504
      %647 = vst.msk [vmem:[#allocation2] sm:$0x3] %vm646, %v644
      %v648 = vrot.slane %v218, 4
      %v650 = vmul.f32 %v205, %v648
      %v651 = vmul.f32 %v207, %v545
      %v652 = vmul.f32 %v209, %v442
      %v653 = vmul.f32 %v211, %v339
      %v654 = vrot.slane %v233, 4
      %v656 = vadd.f32 %v650, %v654
      %v657 = vadd.f32 %v651, %v551
      %v658 = vadd.f32 %v652, %v448
      %v659 = vadd.f32 %v653, %v345
      %v660 = vmax.f32 %v656, 0.0
      %v661 = vmax.f32 %v657, 0.0
      %v662 = vmax.f32 %v658, 0.0
      %v663 = vmax.f32 %v659, 0.0
      %v664 = vpack.c.bf16 %v660, %v660
      %v665 = vpack.c.bf16 %v661, %v661
      %v666 = vpack.c.bf16 %v662, %v662
      %v667 = vpack.c.bf16 %v663, %v663
      %v673 = vunpack.c.l.s4 1983009808
      %v674 = vunpack.c.0.s8 %v673
      %v675 = vlaneseq
      %v676 = vshrl.u32 %v675, 7
      %v677 = vsub.s32 %v674, %v676
      %v678 = vrot.slane %v664, %v677
      %v679 = vcombine.high %v678, %v678
      %v681 = vunpack.c.l.s4 1983009808
      %v682 = vunpack.c.0.s8 %v681
      %v683 = vlaneseq
      %v684 = vshrl.u32 %v683, 7
      %v685 = vsub.s32 %v682, %v684
      %v686 = vrot.slane %v665, %v685
      %v687 = vcombine.high %v686, %v686
      %v689 = vunpack.c.l.s4 1983009808
      %v690 = vunpack.c.0.s8 %v689
      %v691 = vlaneseq
      %v692 = vshrl.u32 %v691, 7
      %v693 = vsub.s32 %v690, %v692
      %v694 = vrot.slane %v666, %v693
      %v695 = vcombine.high %v694, %v694
      %v697 = vunpack.c.l.s4 1983009808
      %v698 = vunpack.c.0.s8 %v697
      %v699 = vlaneseq
      %v700 = vshrl.u32 %v699, 7
      %v701 = vsub.s32 %v698, %v700
      %v702 = vrot.slane %v667, %v701
      %v703 = vcombine.high %v702, %v702
      %v705 = vunpack.c.l.s4 1983009808
      %v706 = vunpack.c.0.s8 %v705
      %v707 = vlaneseq
      %v708 = vshrl.u32 %v707, 7
      %v709 = vsub.s32 %v706, %v708
      %v710 = vrot.slane %v679, %v709
      %v712 = vunpack.c.l.s4 1983009808
      %v713 = vunpack.c.0.s8 %v712
      %v714 = vlaneseq
      %v715 = vshrl.u32 %v714, 7
      %v716 = vsub.s32 %v713, %v715
      %v717 = vrot.slane %v687, %v716
      %v719 = vunpack.c.l.s4 1983009808
      %v720 = vunpack.c.0.s8 %v719
      %v721 = vlaneseq
      %v722 = vshrl.u32 %v721, 7
      %v723 = vsub.s32 %v720, %v722
      %v724 = vrot.slane %v695, %v723
      %v726 = vunpack.c.l.s4 1983009808
      %v727 = vunpack.c.0.s8 %v726
      %v728 = vlaneseq
      %v729 = vshrl.u32 %v728, 7
      %v730 = vsub.s32 %v727, %v729
      %v731 = vrot.slane %v703, %v730
      %v732 = vunpack.c.l.b16 %v710
      %v733 = vunpack.c.l.b16 %v717
      %v734 = vunpack.c.l.b16 %v724
      %v735 = vunpack.c.l.b16 %v731
      %v736 = vrot.slane %v733, 7
      %v737 = vsel %vm318, %v736, %v732
      %v738 = vrot.slane %v734, 6
      %v739 = vsel %vm321, %v738, %v737
      %v740 = vrot.slane %v735, 5
      %v741 = vsel %vm324, %v740, %v739
      %v742 = vpack.c.b16 %v741, %v741
      %v744 = vunpack.c.l.s4 1983009808
      %v745 = vunpack.c.0.s8 %v744
      %v746 = vlaneseq
      %v747 = vshrl.u32 %v746, 7
      %v748 = vsub.s32 %v745, %v747
      %v749 = vrot.slane %v742, %v748
      %750 = vrot.lane.b32.xlu0 %v749, 91
      %v751 = vpop.permute.xlu0 %750
      %vm753 = vcmask 870104
      %754 = vst.msk [vmem:[#allocation2] sm:$0x3] %vm753, %v751
      %v755 = vmul.f32 %v205, %v221
      %v756 = vmul.f32 %v207, %v648
      %v757 = vmul.f32 %v209, %v545
      %v758 = vmul.f32 %v211, %v442
      %v759 = vadd.f32 %v755, %v236
      %v760 = vadd.f32 %v756, %v654
      %v761 = vadd.f32 %v757, %v551
      %v762 = vadd.f32 %v758, %v448
      %v763 = vmax.f32 %v759, 0.0
      %v764 = vmax.f32 %v760, 0.0
      %v765 = vmax.f32 %v761, 0.0
      %v766 = vmax.f32 %v762, 0.0
      %v767 = vpack.c.bf16 %v763, %v763
      %v768 = vpack.c.bf16 %v764, %v764
      %v769 = vpack.c.bf16 %v765, %v765
      %v770 = vpack.c.bf16 %v766, %v766
      %v776 = vunpack.c.l.s4 1983009808
      %v777 = vunpack.c.0.s8 %v776
      %v778 = vlaneseq
      %v779 = vshrl.u32 %v778, 7
      %v780 = vsub.s32 %v777, %v779
      %v781 = vrot.slane %v767, %v780
      %v782 = vcombine.high %v781, %v781
      %v784 = vunpack.c.l.s4 1983009808
      %v785 = vunpack.c.0.s8 %v784
      %v786 = vlaneseq
      %v787 = vshrl.u32 %v786, 7
      %v788 = vsub.s32 %v785, %v787
      %v789 = vrot.slane %v768, %v788
      %v790 = vcombine.high %v789, %v789
      %v792 = vunpack.c.l.s4 1983009808
      %v793 = vunpack.c.0.s8 %v792
      %v794 = vlaneseq
      %v795 = vshrl.u32 %v794, 7
      %v796 = vsub.s32 %v793, %v795
      %v797 = vrot.slane %v769, %v796
      %v798 = vcombine.high %v797, %v797
      %v800 = vunpack.c.l.s4 1983009808
      %v801 = vunpack.c.0.s8 %v800
      %v802 = vlaneseq
      %v803 = vshrl.u32 %v802, 7
      %v804 = vsub.s32 %v801, %v803
      %v805 = vrot.slane %v770, %v804
      %v806 = vcombine.high %v805, %v805
      %v808 = vunpack.c.l.s4 1983009808
      %v809 = vunpack.c.0.s8 %v808
      %v810 = vlaneseq
      %v811 = vshrl.u32 %v810, 7
      %v812 = vsub.s32 %v809, %v811
      %v813 = vrot.slane %v782, %v812
      %v815 = vunpack.c.l.s4 1983009808
      %v816 = vunpack.c.0.s8 %v815
      %v817 = vlaneseq
      %v818 = vshrl.u32 %v817, 7
      %v819 = vsub.s32 %v816, %v818
      %v820 = vrot.slane %v790, %v819
      %v822 = vunpack.c.l.s4 1983009808
      %v823 = vunpack.c.0.s8 %v822
      %v824 = vlaneseq
      %v825 = vshrl.u32 %v824, 7
      %v826 = vsub.s32 %v823, %v825
      %v827 = vrot.slane %v798, %v826
      %v829 = vunpack.c.l.s4 1983009808
      %v830 = vunpack.c.0.s8 %v829
      %v831 = vlaneseq
      %v832 = vshrl.u32 %v831, 7
      %v833 = vsub.s32 %v830, %v832
      %v834 = vrot.slane %v806, %v833
      %v835 = vunpack.c.l.b16 %v813
      %v836 = vunpack.c.l.b16 %v820
      %v837 = vunpack.c.l.b16 %v827
      %v838 = vunpack.c.l.b16 %v834
      %v839 = vrot.slane %v835, 1
      %v840 = vsel %vm318, %v836, %v839
      %v841 = vrot.slane %v837, 7
      %v842 = vsel %vm321, %v841, %v840
      %v843 = vrot.slane %v838, 6
      %v844 = vsel %vm324, %v843, %v842
      %v845 = vpack.c.b16 %v844, %v844
      %v847 = vunpack.c.l.s4 1983009808
      %v848 = vunpack.c.0.s8 %v847
      %v849 = vlaneseq
      %v850 = vshrl.u32 %v849, 7
      %v851 = vsub.s32 %v848, %v850
      %v852 = vrot.slane %v845, %v851
      %853 = vrot.lane.b32.xlu0 %v852, 109
      %v854 = vpop.permute.xlu0 %853
      %vm856 = vcmask 1017704
      %857 = vst.msk [vmem:[#allocation2] sm:$0x3] %vm856, %v854
      %v858 = vmul.f32 %v205, %v220
      %v859 = vmul.f32 %v207, %v221
      %v860 = vmul.f32 %v209, %v648
      %v861 = vmul.f32 %v211, %v545
      %v862 = vadd.f32 %v858, %v235
      %v863 = vadd.f32 %v859, %v236
      %v864 = vadd.f32 %v860, %v654
      %v865 = vadd.f32 %v861, %v551
      %v866 = vmax.f32 %v862, 0.0
      %v867 = vmax.f32 %v863, 0.0
      %v868 = vmax.f32 %v864, 0.0
      %v869 = vmax.f32 %v865, 0.0
      %v870 = vpack.c.bf16 %v866, %v866
      %v871 = vpack.c.bf16 %v867, %v867
      %v872 = vpack.c.bf16 %v868, %v868
      %v873 = vpack.c.bf16 %v869, %v869
      %v879 = vunpack.c.l.s4 1983009808
      %v880 = vunpack.c.0.s8 %v879
      %v881 = vlaneseq
      %v882 = vshrl.u32 %v881, 7
      %v883 = vsub.s32 %v880, %v882
      %v884 = vrot.slane %v870, %v883
      %v885 = vcombine.high %v884, %v884
      %v887 = vunpack.c.l.s4 1983009808
      %v888 = vunpack.c.0.s8 %v887
      %v889 = vlaneseq
      %v890 = vshrl.u32 %v889, 7
      %v891 = vsub.s32 %v888, %v890
      %v892 = vrot.slane %v871, %v891
      %v893 = vcombine.high %v892, %v892
      %v895 = vunpack.c.l.s4 1983009808
      %v896 = vunpack.c.0.s8 %v895
      %v897 = vlaneseq
      %v898 = vshrl.u32 %v897, 7
      %v899 = vsub.s32 %v896, %v898
      %v900 = vrot.slane %v872, %v899
      %v901 = vcombine.high %v900, %v900
      %v903 = vunpack.c.l.s4 1983009808
      %v904 = vunpack.c.0.s8 %v903
      %v905 = vlaneseq
      %v906 = vshrl.u32 %v905, 7
      %v907 = vsub.s32 %v904, %v906
      %v908 = vrot.slane %v873, %v907
      %v909 = vcombine.high %v908, %v908
      %v911 = vunpack.c.l.s4 1983009808
      %v912 = vunpack.c.0.s8 %v911
      %v913 = vlaneseq
      %v914 = vshrl.u32 %v913, 7
      %v915 = vsub.s32 %v912, %v914
      %v916 = vrot.slane %v885, %v915
      %v918 = vunpack.c.l.s4 1983009808
      %v919 = vunpack.c.0.s8 %v918
      %v920 = vlaneseq
      %v921 = vshrl.u32 %v920, 7
      %v922 = vsub.s32 %v919, %v921
      %v923 = vrot.slane %v893, %v922
      %v925 = vunpack.c.l.s4 1983009808
      %v926 = vunpack.c.0.s8 %v925
      %v927 = vlaneseq
      %v928 = vshrl.u32 %v927, 7
      %v929 = vsub.s32 %v926, %v928
      %v930 = vrot.slane %v901, %v929
      %v932 = vunpack.c.l.s4 1983009808
      %v933 = vunpack.c.0.s8 %v932
      %v934 = vlaneseq
      %v935 = vshrl.u32 %v934, 7
      %v936 = vsub.s32 %v933, %v935
      %v937 = vrot.slane %v909, %v936
      %v938 = vunpack.c.l.b16 %v916
      %v939 = vunpack.c.l.b16 %v923
      %v940 = vunpack.c.l.b16 %v930
      %v941 = vunpack.c.l.b16 %v937
      %v942 = vrot.slane %v938, 2
      %v943 = vrot.slane %v939, 1
      %v944 = vsel %vm318, %v943, %v942
      %v945 = vsel %vm321, %v940, %v944
      %v946 = vrot.slane %v941, 7
      %v947 = vsel %vm324, %v946, %v945
      %v948 = vpack.c.b16 %v947, %v947
      %v950 = vunpack.c.l.s4 1983009808
      %v951 = vunpack.c.0.s8 %v950
      %v952 = vlaneseq
      %v953 = vshrl.u32 %v952, 7
      %v954 = vsub.s32 %v951, %v953
      %v955 = vrot.slane %v948, %v954
      %956 = vrot.lane.b32.xlu0 %v955, 127
      %v957 = vpop.permute.xlu0 %956
      %v958 = vrot.slane %v957, 6
      %vm959 = vcmask 1039360
      %v960 = vsel %vm959, %v958, %v957
      %vm962 = vcmask 1042424
      %vm963 = vcmask 117762
      %vm964 = vmor %vm963, %vm962
      %965 = vst.msk [vmem:[#allocation2] sm:$0xf] %vm964, %v960
      %v966 = vmul.f32 %v205, %v219
      %v967 = vmul.f32 %v207, %v220
      %v968 = vmul.f32 %v209, %v221
      %v969 = vmul.f32 %v211, %v648
      %v970 = vadd.f32 %v966, %v234
      %v971 = vadd.f32 %v967, %v235
      %v972 = vadd.f32 %v968, %v236
      %v973 = vadd.f32 %v969, %v654
      %v974 = vmax.f32 %v970, 0.0
      %v975 = vmax.f32 %v971, 0.0
      %v976 = vmax.f32 %v972, 0.0
      %v977 = vmax.f32 %v973, 0.0
      %v978 = vpack.c.bf16 %v974, %v974
      %v979 = vpack.c.bf16 %v975, %v975
      %v980 = vpack.c.bf16 %v976, %v976
      %v981 = vpack.c.bf16 %v977, %v977
      %v987 = vunpack.c.l.s4 1983009808
      %v988 = vunpack.c.0.s8 %v987
      %v989 = vlaneseq
      %v990 = vshrl.u32 %v989, 7
      %v991 = vsub.s32 %v988, %v990
      %v992 = vrot.slane %v978, %v991
      %v993 = vcombine.high %v992, %v992
      %v995 = vunpack.c.l.s4 1983009808
      %v996 = vunpack.c.0.s8 %v995
      %v997 = vlaneseq
      %v998 = vshrl.u32 %v997, 7
      %v999 = vsub.s32 %v996, %v998
      %v1000 = vrot.slane %v979, %v999
      %v1001 = vcombine.high %v1000, %v1000
      %v1003 = vunpack.c.l.s4 1983009808
      %v1004 = vunpack.c.0.s8 %v1003
      %v1005 = vlaneseq
      %v1006 = vshrl.u32 %v1005, 7
      %v1007 = vsub.s32 %v1004, %v1006
      %v1008 = vrot.slane %v980, %v1007
      %v1009 = vcombine.high %v1008, %v1008
      %v1011 = vunpack.c.l.s4 1983009808
      %v1012 = vunpack.c.0.s8 %v1011
      %v1013 = vlaneseq
      %v1014 = vshrl.u32 %v1013, 7
      %v1015 = vsub.s32 %v1012, %v1014
      %v1016 = vrot.slane %v981, %v1015
      %v1017 = vcombine.high %v1016, %v1016
      %v1019 = vunpack.c.l.s4 1983009808
      %v1020 = vunpack.c.0.s8 %v1019
      %v1021 = vlaneseq
      %v1022 = vshrl.u32 %v1021, 7
      %v1023 = vsub.s32 %v1020, %v1022
      %v1024 = vrot.slane %v993, %v1023
      %v1026 = vunpack.c.l.s4 1983009808
      %v1027 = vunpack.c.0.s8 %v1026
      %v1028 = vlaneseq
      %v1029 = vshrl.u32 %v1028, 7
      %v1030 = vsub.s32 %v1027, %v1029
      %v1031 = vrot.slane %v1001, %v1030
      %v1033 = vunpack.c.l.s4 1983009808
      %v1034 = vunpack.c.0.s8 %v1033
      %v1035 = vlaneseq
      %v1036 = vshrl.u32 %v1035, 7
      %v1037 = vsub.s32 %v1034, %v1036
      %v1038 = vrot.slane %v1009, %v1037
      %v1040 = vunpack.c.l.s4 1983009808
      %v1041 = vunpack.c.0.s8 %v1040
      %v1042 = vlaneseq
      %v1043 = vshrl.u32 %v1042, 7
      %v1044 = vsub.s32 %v1041, %v1043
      %v1045 = vrot.slane %v1017, %v1044
      %v1046 = vunpack.c.l.b16 %v1024
      %v1047 = vunpack.c.l.b16 %v1031
      %v1048 = vunpack.c.l.b16 %v1038
      %v1049 = vunpack.c.l.b16 %v1045
      %v1050 = vrot.slane %v1046, 3
      %v1051 = vrot.slane %v1047, 2
      %v1052 = vsel %vm318, %v1051, %v1050
      %v1053 = vrot.slane %v1048, 1
      %v1054 = vsel %vm321, %v1053, %v1052
      %v1055 = vsel %vm324, %v1049, %v1054
      %v1056 = vpack.c.b16 %v1055, %v1055
      %v1058 = vunpack.c.l.s4 1983009808
      %v1059 = vunpack.c.0.s8 %v1058
      %v1060 = vlaneseq
      %v1061 = vshrl.u32 %v1060, 7
      %v1062 = vsub.s32 %v1059, %v1061
      %v1063 = vrot.slane %v1056, %v1062
      %1064 = vrot.lane.b32.xlu0 %v1063, 17
      %v1065 = vpop.permute.xlu0 %1064
      %vm1067 = vcmask 263304
      %1068 = vst.msk [vmem:[#allocation2 + $0x2] sm:$0x3] %vm1067, %v1065
      %v1069 = vmul.f32 %v206, %v218
      %v1070 = vmul.f32 %v208, %v219
      %v1071 = vmul.f32 %v210, %v220
      %v1072 = vmul.f32 %v212, %v221
      %v1073 = vadd.f32 %v1069, %v233
      %v1074 = vadd.f32 %v1070, %v234
      %v1075 = vadd.f32 %v1071, %v235
      %v1076 = vadd.f32 %v1072, %v236
      %v1077 = vmax.f32 %v1073, 0.0
      %v1078 = vmax.f32 %v1074, 0.0
      %v1079 = vmax.f32 %v1075, 0.0
      %v1080 = vmax.f32 %v1076, 0.0
      %v1081 = vpack.c.bf16 %v1077, %v1077
      %v1082 = vpack.c.bf16 %v1078, %v1078
      %v1083 = vpack.c.bf16 %v1079, %v1079
      %v1084 = vpack.c.bf16 %v1080, %v1080
      %v1090 = vunpack.c.l.s4 1983009808
      %v1091 = vunpack.c.0.s8 %v1090
      %v1092 = vlaneseq
      %v1093 = vshrl.u32 %v1092, 7
      %v1094 = vsub.s32 %v1091, %v1093
      %v1095 = vrot.slane %v1081, %v1094
      %v1097 = vunpack.c.l.s4 1983009808
      %v1098 = vunpack.c.0.s8 %v1097
      %v1099 = vlaneseq
      %v1100 = vshrl.u32 %v1099, 7
      %v1101 = vsub.s32 %v1098, %v1100
      %v1102 = vrot.slane %v1082, %v1101
      %v1104 = vunpack.c.l.s4 1983009808
      %v1105 = vunpack.c.0.s8 %v1104
      %v1106 = vlaneseq
      %v1107 = vshrl.u32 %v1106, 7
      %v1108 = vsub.s32 %v1105, %v1107
      %v1109 = vrot.slane %v1083, %v1108
      %v1111 = vunpack.c.l.s4 1983009808
      %v1112 = vunpack.c.0.s8 %v1111
      %v1113 = vlaneseq
      %v1114 = vshrl.u32 %v1113, 7
      %v1115 = vsub.s32 %v1112, %v1114
      %v1116 = vrot.slane %v1084, %v1115
      %v1118 = vunpack.c.l.s4 1983009808
      %v1119 = vunpack.c.0.s8 %v1118
      %v1120 = vlaneseq
      %v1121 = vshrl.u32 %v1120, 7
      %v1122 = vsub.s32 %v1119, %v1121
      %v1123 = vrot.slane %v1095, %v1122
      %v1125 = vunpack.c.l.s4 1983009808
      %v1126 = vunpack.c.0.s8 %v1125
      %v1127 = vlaneseq
      %v1128 = vshrl.u32 %v1127, 7
      %v1129 = vsub.s32 %v1126, %v1128
      %v1130 = vrot.slane %v1102, %v1129
      %v1132 = vunpack.c.l.s4 1983009808
      %v1133 = vunpack.c.0.s8 %v1132
      %v1134 = vlaneseq
      %v1135 = vshrl.u32 %v1134, 7
      %v1136 = vsub.s32 %v1133, %v1135
      %v1137 = vrot.slane %v1109, %v1136
      %v1139 = vunpack.c.l.s4 1983009808
      %v1140 = vunpack.c.0.s8 %v1139
      %v1141 = vlaneseq
      %v1142 = vshrl.u32 %v1141, 7
      %v1143 = vsub.s32 %v1140, %v1142
      %v1144 = vrot.slane %v1116, %v1143
      %v1145 = vunpack.c.l.b16 %v1123
      %v1146 = vunpack.c.l.b16 %v1130
      %v1147 = vunpack.c.l.b16 %v1137
      %v1148 = vunpack.c.l.b16 %v1144
      %v1149 = vrot.slane %v1146, 7
      %v1150 = vsel %vm318, %v1149, %v1145
      %v1151 = vrot.slane %v1147, 6
      %v1152 = vsel %vm321, %v1151, %v1150
      %v1153 = vrot.slane %v1148, 5
      %v1154 = vsel %vm324, %v1153, %v1152
      %v1155 = vpack.c.b16 %v1154, %v1154
      %v1157 = vunpack.c.l.s4 1983009808
      %v1158 = vunpack.c.0.s8 %v1157
      %v1159 = vlaneseq
      %v1160 = vshrl.u32 %v1159, 7
      %v1161 = vsub.s32 %v1158, %v1160
      %v1162 = vrot.slane %v1155, %v1161
      %1163 = vrot.lane.b32.xlu0 %v1162, 35
      %v1164 = vpop.permute.xlu0 %1163
      %vm1166 = vcmask 410904
      %1167 = vst.msk [vmem:[#allocation2 + $0x2] sm:$0x3] %vm1166, %v1164
      %v1168 = vmul.f32 %v206, %v339
      %v1169 = vmul.f32 %v208, %v218
      %v1170 = vmul.f32 %v210, %v219
      %v1171 = vmul.f32 %v212, %v220
      %v1172 = vadd.f32 %v1168, %v345
      %v1173 = vadd.f32 %v1169, %v233
      %v1174 = vadd.f32 %v1170, %v234
      %v1175 = vadd.f32 %v1171, %v235
      %v1176 = vmax.f32 %v1172, 0.0
      %v1177 = vmax.f32 %v1173, 0.0
      %v1178 = vmax.f32 %v1174, 0.0
      %v1179 = vmax.f32 %v1175, 0.0
      %v1180 = vpack.c.bf16 %v1176, %v1176
      %v1181 = vpack.c.bf16 %v1177, %v1177
      %v1182 = vpack.c.bf16 %v1178, %v1178
      %v1183 = vpack.c.bf16 %v1179, %v1179
      %v1189 = vunpack.c.l.s4 1983009808
      %v1190 = vunpack.c.0.s8 %v1189
      %v1191 = vlaneseq
      %v1192 = vshrl.u32 %v1191, 7
      %v1193 = vsub.s32 %v1190, %v1192
      %v1194 = vrot.slane %v1180, %v1193
      %v1196 = vunpack.c.l.s4 1983009808
      %v1197 = vunpack.c.0.s8 %v1196
      %v1198 = vlaneseq
      %v1199 = vshrl.u32 %v1198, 7
      %v1200 = vsub.s32 %v1197, %v1199
      %v1201 = vrot.slane %v1181, %v1200
      %v1203 = vunpack.c.l.s4 1983009808
      %v1204 = vunpack.c.0.s8 %v1203
      %v1205 = vlaneseq
      %v1206 = vshrl.u32 %v1205, 7
      %v1207 = vsub.s32 %v1204, %v1206
      %v1208 = vrot.slane %v1182, %v1207
      %v1210 = vunpack.c.l.s4 1983009808
      %v1211 = vunpack.c.0.s8 %v1210
      %v1212 = vlaneseq
      %v1213 = vshrl.u32 %v1212, 7
      %v1214 = vsub.s32 %v1211, %v1213
      %v1215 = vrot.slane %v1183, %v1214
      %v1217 = vunpack.c.l.s4 1983009808
      %v1218 = vunpack.c.0.s8 %v1217
      %v1219 = vlaneseq
      %v1220 = vshrl.u32 %v1219, 7
      %v1221 = vsub.s32 %v1218, %v1220
      %v1222 = vrot.slane %v1194, %v1221
      %v1224 = vunpack.c.l.s4 1983009808
      %v1225 = vunpack.c.0.s8 %v1224
      %v1226 = vlaneseq
      %v1227 = vshrl.u32 %v1226, 7
      %v1228 = vsub.s32 %v1225, %v1227
      %v1229 = vrot.slane %v1201, %v1228
      %v1231 = vunpack.c.l.s4 1983009808
      %v1232 = vunpack.c.0.s8 %v1231
      %v1233 = vlaneseq
      %v1234 = vshrl.u32 %v1233, 7
      %v1235 = vsub.s32 %v1232, %v1234
      %v1236 = vrot.slane %v1208, %v1235
      %v1238 = vunpack.c.l.s4 1983009808
      %v1239 = vunpack.c.0.s8 %v1238
      %v1240 = vlaneseq
      %v1241 = vshrl.u32 %v1240, 7
      %v1242 = vsub.s32 %v1239, %v1241
      %v1243 = vrot.slane %v1215, %v1242
      %v1244 = vunpack.c.l.b16 %v1222
      %v1245 = vunpack.c.l.b16 %v1229
      %v1246 = vunpack.c.l.b16 %v1236
      %v1247 = vunpack.c.l.b16 %v1243
      %v1248 = vrot.slane %v1244, 1
      %v1249 = vsel %vm318, %v1245, %v1248
      %v1250 = vrot.slane %v1246, 7
      %v1251 = vsel %vm321, %v1250, %v1249
      %v1252 = vrot.slane %v1247, 6
      %v1253 = vsel %vm324, %v1252, %v1251
      %v1254 = vpack.c.b16 %v1253, %v1253
      %v1256 = vunpack.c.l.s4 1983009808
      %v1257 = vunpack.c.0.s8 %v1256
      %v1258 = vlaneseq
      %v1259 = vshrl.u32 %v1258, 7
      %v1260 = vsub.s32 %v1257, %v1259
      %v1261 = vrot.slane %v1254, %v1260
      %1262 = vrot.lane.b32.xlu0 %v1261, 53
      %v1263 = vpop.permute.xlu0 %1262
      %vm1265 = vcmask 558504
      %1266 = vst.msk [vmem:[#allocation2 + $0x2] sm:$0x3] %vm1265, %v1263
      %v1267 = vmul.f32 %v206, %v442
      %v1268 = vmul.f32 %v208, %v339
      %v1269 = vmul.f32 %v210, %v218
      %v1270 = vmul.f32 %v212, %v219
      %v1271 = vadd.f32 %v1267, %v448
      %v1272 = vadd.f32 %v1268, %v345
      %v1273 = vadd.f32 %v1269, %v233
      %v1274 = vadd.f32 %v1270, %v234
      %v1275 = vmax.f32 %v1271, 0.0
      %v1276 = vmax.f32 %v1272, 0.0
      %v1277 = vmax.f32 %v1273, 0.0
      %v1278 = vmax.f32 %v1274, 0.0
      %v1279 = vpack.c.bf16 %v1275, %v1275
      %v1280 = vpack.c.bf16 %v1276, %v1276
      %v1281 = vpack.c.bf16 %v1277, %v1277
      %v1282 = vpack.c.bf16 %v1278, %v1278
      %v1288 = vunpack.c.l.s4 1983009808
      %v1289 = vunpack.c.0.s8 %v1288
      %v1290 = vlaneseq
      %v1291 = vshrl.u32 %v1290, 7
      %v1292 = vsub.s32 %v1289, %v1291
      %v1293 = vrot.slane %v1279, %v1292
      %v1295 = vunpack.c.l.s4 1983009808
      %v1296 = vunpack.c.0.s8 %v1295
      %v1297 = vlaneseq
      %v1298 = vshrl.u32 %v1297, 7
      %v1299 = vsub.s32 %v1296, %v1298
      %v1300 = vrot.slane %v1280, %v1299
      %v1302 = vunpack.c.l.s4 1983009808
      %v1303 = vunpack.c.0.s8 %v1302
      %v1304 = vlaneseq
      %v1305 = vshrl.u32 %v1304, 7
      %v1306 = vsub.s32 %v1303, %v1305
      %v1307 = vrot.slane %v1281, %v1306
      %v1309 = vunpack.c.l.s4 1983009808
      %v1310 = vunpack.c.0.s8 %v1309
      %v1311 = vlaneseq
      %v1312 = vshrl.u32 %v1311, 7
      %v1313 = vsub.s32 %v1310, %v1312
      %v1314 = vrot.slane %v1282, %v1313
      %v1316 = vunpack.c.l.s4 1983009808
      %v1317 = vunpack.c.0.s8 %v1316
      %v1318 = vlaneseq
      %v1319 = vshrl.u32 %v1318, 7
      %v1320 = vsub.s32 %v1317, %v1319
      %v1321 = vrot.slane %v1293, %v1320
      %v1323 = vunpack.c.l.s4 1983009808
      %v1324 = vunpack.c.0.s8 %v1323
      %v1325 = vlaneseq
      %v1326 = vshrl.u32 %v1325, 7
      %v1327 = vsub.s32 %v1324, %v1326
      %v1328 = vrot.slane %v1300, %v1327
      %v1330 = vunpack.c.l.s4 1983009808
      %v1331 = vunpack.c.0.s8 %v1330
      %v1332 = vlaneseq
      %v1333 = vshrl.u32 %v1332, 7
      %v1334 = vsub.s32 %v1331, %v1333
      %v1335 = vrot.slane %v1307, %v1334
      %v1337 = vunpack.c.l.s4 1983009808
      %v1338 = vunpack.c.0.s8 %v1337
      %v1339 = vlaneseq
      %v1340 = vshrl.u32 %v1339, 7
      %v1341 = vsub.s32 %v1338, %v1340
      %v1342 = vrot.slane %v1314, %v1341
      %v1343 = vunpack.c.l.b16 %v1321
      %v1344 = vunpack.c.l.b16 %v1328
      %v1345 = vunpack.c.l.b16 %v1335
      %v1346 = vunpack.c.l.b16 %v1342
      %v1347 = vrot.slane %v1343, 2
      %v1348 = vrot.slane %v1344, 1
      %v1349 = vsel %vm318, %v1348, %v1347
      %v1350 = vsel %vm321, %v1345, %v1349
      %v1351 = vrot.slane %v1346, 7
      %v1352 = vsel %vm324, %v1351, %v1350
      %v1353 = vpack.c.b16 %v1352, %v1352
      %v1355 = vunpack.c.l.s4 1983009808
      %v1356 = vunpack.c.0.s8 %v1355
      %v1357 = vlaneseq
      %v1358 = vshrl.u32 %v1357, 7
      %v1359 = vsub.s32 %v1356, %v1358
      %v1360 = vrot.slane %v1353, %v1359
      %1361 = vrot.lane.b32.xlu0 %v1360, 71
      %v1362 = vpop.permute.xlu0 %1361
      %vm1364 = vcmask 706104
      %1365 = vst.msk [vmem:[#allocation2 + $0x2] sm:$0x3] %vm1364, %v1362
      %v1366 = vmul.f32 %v206, %v545
      %v1367 = vmul.f32 %v208, %v442
      %v1368 = vmul.f32 %v210, %v339
      %v1369 = vmul.f32 %v212, %v218
      %v1370 = vadd.f32 %v1366, %v551
      %v1371 = vadd.f32 %v1367, %v448
      %v1372 = vadd.f32 %v1368, %v345
      %v1373 = vadd.f32 %v1369, %v233
      %v1374 = vmax.f32 %v1370, 0.0
      %v1375 = vmax.f32 %v1371, 0.0
      %v1376 = vmax.f32 %v1372, 0.0
      %v1377 = vmax.f32 %v1373, 0.0
      %v1378 = vpack.c.bf16 %v1374, %v1374
      %v1379 = vpack.c.bf16 %v1375, %v1375
      %v1380 = vpack.c.bf16 %v1376, %v1376
      %v1381 = vpack.c.bf16 %v1377, %v1377
      %v1387 = vunpack.c.l.s4 1983009808
      %v1388 = vunpack.c.0.s8 %v1387
      %v1389 = vlaneseq
      %v1390 = vshrl.u32 %v1389, 7
      %v1391 = vsub.s32 %v1388, %v1390
      %v1392 = vrot.slane %v1378, %v1391
      %v1394 = vunpack.c.l.s4 1983009808
      %v1395 = vunpack.c.0.s8 %v1394
      %v1396 = vlaneseq
      %v1397 = vshrl.u32 %v1396, 7
      %v1398 = vsub.s32 %v1395, %v1397
      %v1399 = vrot.slane %v1379, %v1398
      %v1401 = vunpack.c.l.s4 1983009808
      %v1402 = vunpack.c.0.s8 %v1401
      %v1403 = vlaneseq
      %v1404 = vshrl.u32 %v1403, 7
      %v1405 = vsub.s32 %v1402, %v1404
      %v1406 = vrot.slane %v1380, %v1405
      %v1408 = vunpack.c.l.s4 1983009808
      %v1409 = vunpack.c.0.s8 %v1408
      %v1410 = vlaneseq
      %v1411 = vshrl.u32 %v1410, 7
      %v1412 = vsub.s32 %v1409, %v1411
      %v1413 = vrot.slane %v1381, %v1412
      %v1415 = vunpack.c.l.s4 1983009808
      %v1416 = vunpack.c.0.s8 %v1415
      %v1417 = vlaneseq
      %v1418 = vshrl.u32 %v1417, 7
      %v1419 = vsub.s32 %v1416, %v1418
      %v1420 = vrot.slane %v1392, %v1419
      %v1422 = vunpack.c.l.s4 1983009808
      %v1423 = vunpack.c.0.s8 %v1422
      %v1424 = vlaneseq
      %v1425 = vshrl.u32 %v1424, 7
      %v1426 = vsub.s32 %v1423, %v1425
      %v1427 = vrot.slane %v1399, %v1426
      %v1429 = vunpack.c.l.s4 1983009808
      %v1430 = vunpack.c.0.s8 %v1429
      %v1431 = vlaneseq
      %v1432 = vshrl.u32 %v1431, 7
      %v1433 = vsub.s32 %v1430, %v1432
      %v1434 = vrot.slane %v1406, %v1433
      %v1436 = vunpack.c.l.s4 1983009808
      %v1437 = vunpack.c.0.s8 %v1436
      %v1438 = vlaneseq
      %v1439 = vshrl.u32 %v1438, 7
      %v1440 = vsub.s32 %v1437, %v1439
      %v1441 = vrot.slane %v1413, %v1440
      %v1442 = vunpack.c.l.b16 %v1420
      %v1443 = vunpack.c.l.b16 %v1427
      %v1444 = vunpack.c.l.b16 %v1434
      %v1445 = vunpack.c.l.b16 %v1441
      %v1446 = vrot.slane %v1442, 3
      %v1447 = vrot.slane %v1443, 2
      %v1448 = vsel %vm318, %v1447, %v1446
      %v1449 = vrot.slane %v1444, 1
      %v1450 = vsel %vm321, %v1449, %v1448
      %v1451 = vsel %vm324, %v1445, %v1450
      %v1452 = vpack.c.b16 %v1451, %v1451
      %v1454 = vunpack.c.l.s4 1983009808
      %v1455 = vunpack.c.0.s8 %v1454
      %v1456 = vlaneseq
      %v1457 = vshrl.u32 %v1456, 7
      %v1458 = vsub.s32 %v1455, %v1457
      %v1459 = vrot.slane %v1452, %v1458
      %1460 = vrot.lane.b32.xlu0 %v1459, 89
      %v1461 = vpop.permute.xlu0 %1460
      %vm1463 = vcmask 853704
      %1464 = vst.msk [vmem:[#allocation2 + $0x2] sm:$0x3] %vm1463, %v1461
      %v1465 = vmul.f32 %v206, %v648
      %v1466 = vmul.f32 %v208, %v545
      %v1467 = vmul.f32 %v210, %v442
      %v1468 = vmul.f32 %v212, %v339
      %v1469 = vadd.f32 %v1465, %v654
      %v1470 = vadd.f32 %v1466, %v551
      %v1471 = vadd.f32 %v1467, %v448
      %v1472 = vadd.f32 %v1468, %v345
      %v1473 = vmax.f32 %v1469, 0.0
      %v1474 = vmax.f32 %v1470, 0.0
      %v1475 = vmax.f32 %v1471, 0.0
      %v1476 = vmax.f32 %v1472, 0.0
      %v1477 = vpack.c.bf16 %v1473, %v1473
      %v1478 = vpack.c.bf16 %v1474, %v1474
      %v1479 = vpack.c.bf16 %v1475, %v1475
      %v1480 = vpack.c.bf16 %v1476, %v1476
      %v1486 = vunpack.c.l.s4 1983009808
      %v1487 = vunpack.c.0.s8 %v1486
      %v1488 = vlaneseq
      %v1489 = vshrl.u32 %v1488, 7
      %v1490 = vsub.s32 %v1487, %v1489
      %v1491 = vrot.slane %v1477, %v1490
      %v1492 = vcombine.high %v1491, %v1491
      %v1494 = vunpack.c.l.s4 1983009808
      %v1495 = vunpack.c.0.s8 %v1494
      %v1496 = vlaneseq
      %v1497 = vshrl.u32 %v1496, 7
      %v1498 = vsub.s32 %v1495, %v1497
      %v1499 = vrot.slane %v1478, %v1498
      %v1500 = vcombine.high %v1499, %v1499
      %v1502 = vunpack.c.l.s4 1983009808
      %v1503 = vunpack.c.0.s8 %v1502
      %v1504 = vlaneseq
      %v1505 = vshrl.u32 %v1504, 7
      %v1506 = vsub.s32 %v1503, %v1505
      %v1507 = vrot.slane %v1479, %v1506
      %v1508 = vcombine.high %v1507, %v1507
      %v1510 = vunpack.c.l.s4 1983009808
      %v1511 = vunpack.c.0.s8 %v1510
      %v1512 = vlaneseq
      %v1513 = vshrl.u32 %v1512, 7
      %v1514 = vsub.s32 %v1511, %v1513
      %v1515 = vrot.slane %v1480, %v1514
      %v1516 = vcombine.high %v1515, %v1515
      %v1518 = vunpack.c.l.s4 1983009808
      %v1519 = vunpack.c.0.s8 %v1518
      %v1520 = vlaneseq
      %v1521 = vshrl.u32 %v1520, 7
      %v1522 = vsub.s32 %v1519, %v1521
      %v1523 = vrot.slane %v1492, %v1522
      %v1525 = vunpack.c.l.s4 1983009808
      %v1526 = vunpack.c.0.s8 %v1525
      %v1527 = vlaneseq
      %v1528 = vshrl.u32 %v1527, 7
      %v1529 = vsub.s32 %v1526, %v1528
      %v1530 = vrot.slane %v1500, %v1529
      %v1532 = vunpack.c.l.s4 1983009808
      %v1533 = vunpack.c.0.s8 %v1532
      %v1534 = vlaneseq
      %v1535 = vshrl.u32 %v1534, 7
      %v1536 = vsub.s32 %v1533, %v1535
      %v1537 = vrot.slane %v1508, %v1536
      %v1539 = vunpack.c.l.s4 1983009808
      %v1540 = vunpack.c.0.s8 %v1539
      %v1541 = vlaneseq
      %v1542 = vshrl.u32 %v1541, 7
      %v1543 = vsub.s32 %v1540, %v1542
      %v1544 = vrot.slane %v1516, %v1543
      %v1545 = vunpack.c.l.b16 %v1523
      %v1546 = vunpack.c.l.b16 %v1530
      %v1547 = vunpack.c.l.b16 %v1537
      %v1548 = vunpack.c.l.b16 %v1544
      %v1549 = vrot.slane %v1546, 7
      %v1550 = vsel %vm318, %v1549, %v1545
      %v1551 = vrot.slane %v1547, 6
      %v1552 = vsel %vm321, %v1551, %v1550
      %v1553 = vrot.slane %v1548, 5
      %v1554 = vsel %vm324, %v1553, %v1552
      %v1555 = vpack.c.b16 %v1554, %v1554
      %v1557 = vunpack.c.l.s4 1983009808
      %v1558 = vunpack.c.0.s8 %v1557
      %v1559 = vlaneseq
      %v1560 = vshrl.u32 %v1559, 7
      %v1561 = vsub.s32 %v1558, %v1560
      %v1562 = vrot.slane %v1555, %v1561
      %1563 = vrot.lane.b32.xlu0 %v1562, 107
      %v1564 = vpop.permute.xlu0 %1563
      %vm1566 = vcmask 1001304
      %1567 = vst.msk [vmem:[#allocation2 + $0x2] sm:$0x3] %vm1566, %v1564
      %v1568 = vmul.f32 %v206, %v221
      %v1569 = vmul.f32 %v208, %v648
      %v1570 = vmul.f32 %v210, %v545
      %v1571 = vmul.f32 %v212, %v442
      %v1572 = vadd.f32 %v1568, %v236
      %v1573 = vadd.f32 %v1569, %v654
      %v1574 = vadd.f32 %v1570, %v551
      %v1575 = vadd.f32 %v1571, %v448
      %v1576 = vmax.f32 %v1572, 0.0
      %v1577 = vmax.f32 %v1573, 0.0
      %v1578 = vmax.f32 %v1574, 0.0
      %v1579 = vmax.f32 %v1575, 0.0
      %v1580 = vpack.c.bf16 %v1576, %v1576
      %v1581 = vpack.c.bf16 %v1577, %v1577
      %v1582 = vpack.c.bf16 %v1578, %v1578
      %v1583 = vpack.c.bf16 %v1579, %v1579
      %v1589 = vunpack.c.l.s4 1983009808
      %v1590 = vunpack.c.0.s8 %v1589
      %v1591 = vlaneseq
      %v1592 = vshrl.u32 %v1591, 7
      %v1593 = vsub.s32 %v1590, %v1592
      %v1594 = vrot.slane %v1580, %v1593
      %v1595 = vcombine.high %v1594, %v1594
      %v1597 = vunpack.c.l.s4 1983009808
      %v1598 = vunpack.c.0.s8 %v1597
      %v1599 = vlaneseq
      %v1600 = vshrl.u32 %v1599, 7
      %v1601 = vsub.s32 %v1598, %v1600
      %v1602 = vrot.slane %v1581, %v1601
      %v1603 = vcombine.high %v1602, %v1602
      %v1605 = vunpack.c.l.s4 1983009808
      %v1606 = vunpack.c.0.s8 %v1605
      %v1607 = vlaneseq
      %v1608 = vshrl.u32 %v1607, 7
      %v1609 = vsub.s32 %v1606, %v1608
      %v1610 = vrot.slane %v1582, %v1609
      %v1611 = vcombine.high %v1610, %v1610
      %v1613 = vunpack.c.l.s4 1983009808
      %v1614 = vunpack.c.0.s8 %v1613
      %v1615 = vlaneseq
      %v1616 = vshrl.u32 %v1615, 7
      %v1617 = vsub.s32 %v1614, %v1616
      %v1618 = vrot.slane %v1583, %v1617
      %v1619 = vcombine.high %v1618, %v1618
      %v1621 = vunpack.c.l.s4 1983009808
      %v1622 = vunpack.c.0.s8 %v1621
      %v1623 = vlaneseq
      %v1624 = vshrl.u32 %v1623, 7
      %v1625 = vsub.s32 %v1622, %v1624
      %v1626 = vrot.slane %v1595, %v1625
      %v1628 = vunpack.c.l.s4 1983009808
      %v1629 = vunpack.c.0.s8 %v1628
      %v1630 = vlaneseq
      %v1631 = vshrl.u32 %v1630, 7
      %v1632 = vsub.s32 %v1629, %v1631
      %v1633 = vrot.slane %v1603, %v1632
      %v1635 = vunpack.c.l.s4 1983009808
      %v1636 = vunpack.c.0.s8 %v1635
      %v1637 = vlaneseq
      %v1638 = vshrl.u32 %v1637, 7
      %v1639 = vsub.s32 %v1636, %v1638
      %v1640 = vrot.slane %v1611, %v1639
      %v1642 = vunpack.c.l.s4 1983009808
      %v1643 = vunpack.c.0.s8 %v1642
      %v1644 = vlaneseq
      %v1645 = vshrl.u32 %v1644, 7
      %v1646 = vsub.s32 %v1643, %v1645
      %v1647 = vrot.slane %v1619, %v1646
      %v1648 = vunpack.c.l.b16 %v1626
      %v1649 = vunpack.c.l.b16 %v1633
      %v1650 = vunpack.c.l.b16 %v1640
      %v1651 = vunpack.c.l.b16 %v1647
      %v1652 = vrot.slane %v1648, 1
      %v1653 = vsel %vm318, %v1649, %v1652
      %v1654 = vrot.slane %v1650, 7
      %v1655 = vsel %vm321, %v1654, %v1653
      %v1656 = vrot.slane %v1651, 6
      %v1657 = vsel %vm324, %v1656, %v1655
      %v1658 = vpack.c.b16 %v1657, %v1657
      %v1660 = vunpack.c.l.s4 1983009808
      %v1661 = vunpack.c.0.s8 %v1660
      %v1662 = vlaneseq
      %v1663 = vshrl.u32 %v1662, 7
      %v1664 = vsub.s32 %v1661, %v1663
      %v1665 = vrot.slane %v1658, %v1664
      %1666 = vrot.lane.b32.xlu0 %v1665, 125
      %v1667 = vpop.permute.xlu0 %1666
      %v1668 = vrot.slane %v1667, 6
      %vm1669 = vcmask 1022976
      %v1670 = vsel %vm1669, %v1668, %v1667
      %vm1672 = vcmask 1042408
      %vm1673 = vcmask 101378
      %vm1674 = vmor %vm1673, %vm1672
      %1675 = vst.msk [vmem:[#allocation2 + $0x2] sm:$0xf] %vm1674, %v1670
      %v1676 = vmul.f32 %v206, %v220
      %v1677 = vmul.f32 %v208, %v221
      %v1678 = vmul.f32 %v210, %v648
      %v1679 = vmul.f32 %v212, %v545
      %v1680 = vadd.f32 %v1676, %v235
      %v1681 = vadd.f32 %v1677, %v236
      %v1682 = vadd.f32 %v1678, %v654
      %v1683 = vadd.f32 %v1679, %v551
      %v1684 = vmax.f32 %v1680, 0.0
      %v1685 = vmax.f32 %v1681, 0.0
      %v1686 = vmax.f32 %v1682, 0.0
      %v1687 = vmax.f32 %v1683, 0.0
      %v1688 = vpack.c.bf16 %v1684, %v1684
      %v1689 = vpack.c.bf16 %v1685, %v1685
      %v1690 = vpack.c.bf16 %v1686, %v1686
      %v1691 = vpack.c.bf16 %v1687, %v1687
      %v1697 = vunpack.c.l.s4 1983009808
      %v1698 = vunpack.c.0.s8 %v1697
      %v1699 = vlaneseq
      %v1700 = vshrl.u32 %v1699, 7
      %v1701 = vsub.s32 %v1698, %v1700
      %v1702 = vrot.slane %v1688, %v1701
      %v1703 = vcombine.high %v1702, %v1702
      %v1705 = vunpack.c.l.s4 1983009808
      %v1706 = vunpack.c.0.s8 %v1705
      %v1707 = vlaneseq
      %v1708 = vshrl.u32 %v1707, 7
      %v1709 = vsub.s32 %v1706, %v1708
      %v1710 = vrot.slane %v1689, %v1709
      %v1711 = vcombine.high %v1710, %v1710
      %v1713 = vunpack.c.l.s4 1983009808
      %v1714 = vunpack.c.0.s8 %v1713
      %v1715 = vlaneseq
      %v1716 = vshrl.u32 %v1715, 7
      %v1717 = vsub.s32 %v1714, %v1716
      %v1718 = vrot.slane %v1690, %v1717
      %v1719 = vcombine.high %v1718, %v1718
      %v1721 = vunpack.c.l.s4 1983009808
      %v1722 = vunpack.c.0.s8 %v1721
      %v1723 = vlaneseq
      %v1724 = vshrl.u32 %v1723, 7
      %v1725 = vsub.s32 %v1722, %v1724
      %v1726 = vrot.slane %v1691, %v1725
      %v1727 = vcombine.high %v1726, %v1726
      %v1729 = vunpack.c.l.s4 1983009808
      %v1730 = vunpack.c.0.s8 %v1729
      %v1731 = vlaneseq
      %v1732 = vshrl.u32 %v1731, 7
      %v1733 = vsub.s32 %v1730, %v1732
      %v1734 = vrot.slane %v1703, %v1733
      %v1736 = vunpack.c.l.s4 1983009808
      %v1737 = vunpack.c.0.s8 %v1736
      %v1738 = vlaneseq
      %v1739 = vshrl.u32 %v1738, 7
      %v1740 = vsub.s32 %v1737, %v1739
      %v1741 = vrot.slane %v1711, %v1740
      %v1743 = vunpack.c.l.s4 1983009808
      %v1744 = vunpack.c.0.s8 %v1743
      %v1745 = vlaneseq
      %v1746 = vshrl.u32 %v1745, 7
      %v1747 = vsub.s32 %v1744, %v1746
      %v1748 = vrot.slane %v1719, %v1747
      %v1750 = vunpack.c.l.s4 1983009808
      %v1751 = vunpack.c.0.s8 %v1750
      %v1752 = vlaneseq
      %v1753 = vshrl.u32 %v1752, 7
      %v1754 = vsub.s32 %v1751, %v1753
      %v1755 = vrot.slane %v1727, %v1754
      %v1756 = vunpack.c.l.b16 %v1734
      %v1757 = vunpack.c.l.b16 %v1741
      %v1758 = vunpack.c.l.b16 %v1748
      %v1759 = vunpack.c.l.b16 %v1755
      %v1760 = vrot.slane %v1756, 2
      %v1761 = vrot.slane %v1757, 1
      %v1762 = vsel %vm318, %v1761, %v1760
      %v1763 = vsel %vm321, %v1758, %v1762
      %v1764 = vrot.slane %v1759, 7
      %v1765 = vsel %vm324, %v1764, %v1763
      %v1766 = vpack.c.b16 %v1765, %v1765
      %v1768 = vunpack.c.l.s4 1983009808
      %v1769 = vunpack.c.0.s8 %v1768
      %v1770 = vlaneseq
      %v1771 = vshrl.u32 %v1770, 7
      %v1772 = vsub.s32 %v1769, %v1771
      %v1773 = vrot.slane %v1766, %v1772
      %1774 = vrot.lane.b32.xlu0 %v1773, 15
      %v1775 = vpop.permute.xlu0 %1774
      %vm1777 = vcmask 246904
      %1778 = vst.msk [vmem:[#allocation2 + $0x4] sm:$0x3] %vm1777, %v1775
      %v1779 = vmul.f32 %v206, %v219
      %v1780 = vmul.f32 %v208, %v220
      %v1781 = vmul.f32 %v210, %v221
      %v1782 = vmul.f32 %v212, %v648
      %v1783 = vadd.f32 %v1779, %v234
      %v1784 = vadd.f32 %v1780, %v235
      %v1785 = vadd.f32 %v1781, %v236
      %v1786 = vadd.f32 %v1782, %v654
      %v1787 = vmax.f32 %v1783, 0.0
      %v1788 = vmax.f32 %v1784, 0.0
      %v1789 = vmax.f32 %v1785, 0.0
      %v1790 = vmax.f32 %v1786, 0.0
      %v1791 = vpack.c.bf16 %v1787, %v1787
      %v1792 = vpack.c.bf16 %v1788, %v1788
      %v1793 = vpack.c.bf16 %v1789, %v1789
      %v1794 = vpack.c.bf16 %v1790, %v1790
      %v1800 = vunpack.c.l.s4 1983009808
      %v1801 = vunpack.c.0.s8 %v1800
      %v1802 = vlaneseq
      %v1803 = vshrl.u32 %v1802, 7
      %v1804 = vsub.s32 %v1801, %v1803
      %v1805 = vrot.slane %v1791, %v1804
      %v1806 = vcombine.high %v1805, %v1805
      %v1808 = vunpack.c.l.s4 1983009808
      %v1809 = vunpack.c.0.s8 %v1808
      %v1810 = vlaneseq
      %v1811 = vshrl.u32 %v1810, 7
      %v1812 = vsub.s32 %v1809, %v1811
      %v1813 = vrot.slane %v1792, %v1812
      %v1814 = vcombine.high %v1813, %v1813
      %v1816 = vunpack.c.l.s4 1983009808
      %v1817 = vunpack.c.0.s8 %v1816
      %v1818 = vlaneseq
      %v1819 = vshrl.u32 %v1818, 7
      %v1820 = vsub.s32 %v1817, %v1819
      %v1821 = vrot.slane %v1793, %v1820
      %v1822 = vcombine.high %v1821, %v1821
      %v1824 = vunpack.c.l.s4 1983009808
      %v1825 = vunpack.c.0.s8 %v1824
      %v1826 = vlaneseq
      %v1827 = vshrl.u32 %v1826, 7
      %v1828 = vsub.s32 %v1825, %v1827
      %v1829 = vrot.slane %v1794, %v1828
      %v1830 = vcombine.high %v1829, %v1829
      %v1832 = vunpack.c.l.s4 1983009808
      %v1833 = vunpack.c.0.s8 %v1832
      %v1834 = vlaneseq
      %v1835 = vshrl.u32 %v1834, 7
      %v1836 = vsub.s32 %v1833, %v1835
      %v1837 = vrot.slane %v1806, %v1836
      %v1839 = vunpack.c.l.s4 1983009808
      %v1840 = vunpack.c.0.s8 %v1839
      %v1841 = vlaneseq
      %v1842 = vshrl.u32 %v1841, 7
      %v1843 = vsub.s32 %v1840, %v1842
      %v1844 = vrot.slane %v1814, %v1843
      %v1846 = vunpack.c.l.s4 1983009808
      %v1847 = vunpack.c.0.s8 %v1846
      %v1848 = vlaneseq
      %v1849 = vshrl.u32 %v1848, 7
      %v1850 = vsub.s32 %v1847, %v1849
      %v1851 = vrot.slane %v1822, %v1850
      %v1853 = vunpack.c.l.s4 1983009808
      %v1854 = vunpack.c.0.s8 %v1853
      %v1855 = vlaneseq
      %v1856 = vshrl.u32 %v1855, 7
      %v1857 = vsub.s32 %v1854, %v1856
      %v1858 = vrot.slane %v1830, %v1857
      %v1859 = vunpack.c.l.b16 %v1837
      %v1860 = vunpack.c.l.b16 %v1844
      %v1861 = vunpack.c.l.b16 %v1851
      %v1862 = vunpack.c.l.b16 %v1858
      %v1863 = vrot.slane %v1859, 3
      %v1864 = vrot.slane %v1860, 2
      %v1865 = vsel %vm318, %v1864, %v1863
      %v1866 = vrot.slane %v1861, 1
      %v1867 = vsel %vm321, %v1866, %v1865
      %v1868 = vsel %vm324, %v1862, %v1867
      %v1869 = vpack.c.b16 %v1868, %v1868
      %v1871 = vunpack.c.l.s4 1983009808
      %v1872 = vunpack.c.0.s8 %v1871
      %v1873 = vlaneseq
      %v1874 = vshrl.u32 %v1873, 7
      %v1875 = vsub.s32 %v1872, %v1874
      %v1876 = vrot.slane %v1869, %v1875
      %1877 = vrot.lane.b32.xlu0 %v1876, 33
      %v1878 = vpop.permute.xlu0 %1877
      %vm1880 = vcmask 394504
      %1881 = vst.msk [vmem:[#allocation2 + $0x4] sm:$0x3] %vm1880, %v1878
      %v1882 = vld [vmem:[#allocation2] sm:$0x3f]
      %v1884 = vcombine.high %v1882, %v1882
      %v1886 = vunpack.c.l.s4 1983009808
      %v1887 = vunpack.c.0.s8 %v1886
      %v1888 = vlaneseq
      %v1889 = vshrl.u32 %v1888, 7
      %v1890 = vsub.s32 %v1887, %v1889
      %v1891 = vrot.slane %v1882, %v1890
      %v1893 = vunpack.c.l.s4 1983009808
      %v1894 = vunpack.c.0.s8 %v1893
      %v1895 = vlaneseq
      %v1896 = vshrl.u32 %v1895, 7
      %v1897 = vsub.s32 %v1894, %v1896
      %v1898 = vrot.slane %v1884, %v1897
      %1901 = vst [vmem:[#allocation3] sm:$0x33] %v1891
      %vm1902 = vcmask 254976
      %1903 = vst.msk [vmem:[#allocation3 + $0x8] sm:$0x3] %vm1902, %v1898
      %v1904 = vld [vmem:[#allocation2] sm:$0x3f]
      %v1906 = vcombine.low %v1904, %v1904
      %v1908 = vunpack.c.l.s4 1983009808
      %v1909 = vunpack.c.0.s8 %v1908
      %v1910 = vlaneseq
      %v1911 = vshrl.u32 %v1910, 7
      %v1912 = vsub.s32 %v1909, %v1911
      %v1913 = vrot.slane %v1906, %v1912
      %v1915 = vunpack.c.l.s4 1983009808
      %v1916 = vunpack.c.0.s8 %v1915
      %v1917 = vlaneseq
      %v1918 = vshrl.u32 %v1917, 7
      %v1919 = vsub.s32 %v1916, %v1918
      %v1920 = vrot.slane %v1904, %v1919
      %1921 = vrot.lane.b32.xlu0 %v1913, 127
      %v1922 = vpop.permute.xlu0 %1921
      %1923 = vrot.lane.b32.xlu0 %v1920, 127
      %v1924 = vpop.permute.xlu0 %1923
      %v1925 = vrot.slane %v1922, 4
      %v1926 = vrot.slane %v1924, 4
      %vm1927 = vcmask 1043456
      %v1928 = vsel %vm1927, %v1925, %v1926
      %v1929 = vsel %vm959, %v1922, %v1928
      %1932 = vst [vmem:[#allocation3] sm:$0xcc] %v1929
      %vm1933 = vcmask 257026
      %1934 = vst.msk [vmem:[#allocation3 + $0x8] sm:$0xc] %vm1933, %v1924
      %v1935 = vld [vmem:[#allocation2] sm:$0x3f]
      %v1937 = vcombine.high %v1935, %v1935
      %v1939 = vunpack.c.l.s4 1983009808
      %v1940 = vunpack.c.0.s8 %v1939
      %v1941 = vlaneseq
      %v1942 = vshrl.u32 %v1941, 7
      %v1943 = vsub.s32 %v1940, %v1942
      %v1944 = vrot.slane %v1935, %v1943
      %v1946 = vunpack.c.l.s4 1983009808
      %v1947 = vunpack.c.0.s8 %v1946
      %v1948 = vlaneseq
      %v1949 = vshrl.u32 %v1948, 7
      %v1950 = vsub.s32 %v1947, %v1949
      %v1951 = vrot.slane %v1937, %v1950
      %1952 = vrot.lane.b32.xlu0 %v1944, 126
      %v1953 = vpop.permute.xlu0 %1952
      %1954 = vrot.lane.b32.xlu0 %v1951, 126
      %v1955 = vpop.permute.xlu0 %1954
      %v1956 = vrot.slane %v1953, 4
      %v1957 = vrot.slane %v1955, 4
      %v1958 = vsel %vm1927, %v1956, %v1957
      %vm1959 = vcmask 1031168
      %v1960 = vsel %vm1959, %v1953, %v1958
      %1963 = vst [vmem:[#allocation3 + $0xc] sm:$0x33] %v1960
      %1964 = vst.msk [vmem:[#allocation3 + $0x14] sm:$0x3] %vm1902, %v1955
      %v1965 = vld [vmem:[#allocation2] sm:$0x3f]
      %v1967 = vcombine.low %v1965, %v1965
      %v1969 = vunpack.c.l.s4 1983009808
      %v1970 = vunpack.c.0.s8 %v1969
      %v1971 = vlaneseq
      %v1972 = vshrl.u32 %v1971, 7
      %v1973 = vsub.s32 %v1970, %v1972
      %v1974 = vrot.slane %v1967, %v1973
      %v1976 = vunpack.c.l.s4 1983009808
      %v1977 = vunpack.c.0.s8 %v1976
      %v1978 = vlaneseq
      %v1979 = vshrl.u32 %v1978, 7
      %v1980 = vsub.s32 %v1977, %v1979
      %v1981 = vrot.slane %v1965, %v1980
      %1982 = vrot.lane.b32.xlu0 %v1974, 110
      %v1983 = vpop.permute.xlu0 %1982
      %1984 = vrot.lane.b32.xlu0 %v1981, 110
      %v1985 = vpop.permute.xlu0 %1984
      %v1986 = vrot.slane %v1983, 4
      %v1987 = vrot.slane %v1985, 4
      %v1988 = vsel %vm1927, %v1986, %v1987
      %vm1989 = vcmask 900096
      %v1990 = vsel %vm1989, %v1983, %v1988
      %1993 = vst [vmem:[#allocation3 + $0xc] sm:$0xcc] %v1990
      %1994 = vst.msk [vmem:[#allocation3 + $0x14] sm:$0xc] %vm1933, %v1985
      %v1995 = vld [vmem:[#allocation2] sm:$0x3f]
      %v1997 = vcombine.high %v1995, %v1995
      %v1999 = vunpack.c.l.s4 1983009808
      %v2000 = vunpack.c.0.s8 %v1999
      %v2001 = vlaneseq
      %v2002 = vshrl.u32 %v2001, 7
      %v2003 = vsub.s32 %v2000, %v2002
      %v2004 = vrot.slane %v1995, %v2003
      %v2006 = vunpack.c.l.s4 1983009808
      %v2007 = vunpack.c.0.s8 %v2006
      %v2008 = vlaneseq
      %v2009 = vshrl.u32 %v2008, 7
      %v2010 = vsub.s32 %v2007, %v2009
      %v2011 = vrot.slane %v1997, %v2010
      %2012 = vrot.lane.b32.xlu0 %v2004, 109
      %v2013 = vpop.permute.xlu0 %2012
      %2014 = vrot.lane.b32.xlu0 %v2011, 109
      %v2015 = vpop.permute.xlu0 %2014
      %v2016 = vrot.slane %v2013, 4
      %v2017 = vrot.slane %v2015, 4
      %v2018 = vsel %vm1927, %v2016, %v2017
      %vm2019 = vcmask 891904
      %v2020 = vsel %vm2019, %v2013, %v2018
      %2023 = vst [vmem:[#allocation3 + $0x18] sm:$0x33] %v2020
      %2024 = vst.msk [vmem:[#allocation3 + $0x20] sm:$0x3] %vm1902, %v2015
      %v2025 = vld [vmem:[#allocation2] sm:$0x3f]
      %v2027 = vcombine.low %v2025, %v2025
      %v2029 = vunpack.c.l.s4 1983009808
      %v2030 = vunpack.c.0.s8 %v2029
      %v2031 = vlaneseq
      %v2032 = vshrl.u32 %v2031, 7
      %v2033 = vsub.s32 %v2030, %v2032
      %v2034 = vrot.slane %v2027, %v2033
      %v2036 = vunpack.c.l.s4 1983009808
      %v2037 = vunpack.c.0.s8 %v2036
      %v2038 = vlaneseq
      %v2039 = vshrl.u32 %v2038, 7
      %v2040 = vsub.s32 %v2037, %v2039
      %v2041 = vrot.slane %v2025, %v2040
      %2042 = vrot.lane.b32.xlu0 %v2034, 108
      %v2043 = vpop.permute.xlu0 %2042
      %2044 = vrot.lane.b32.xlu0 %v2041, 108
      %v2045 = vpop.permute.xlu0 %2044
      %v2046 = vrot.slane %v2043, 4
      %v2047 = vrot.slane %v2045, 4
      %v2048 = vsel %vm1927, %v2046, %v2047
      %vm2049 = vcmask 883712
      %v2050 = vsel %vm2049, %v2043, %v2048
      %2053 = vst [vmem:[#allocation3 + $0x18] sm:$0xcc] %v2050
      %2054 = vst.msk [vmem:[#allocation3 + $0x20] sm:$0xc] %vm1933, %v2045
      %v2055 = vld [vmem:[#allocation2] sm:$0x3f]
      %v2057 = vcombine.high %v2055, %v2055
      %v2059 = vunpack.c.l.s4 1983009808
      %v2060 = vunpack.c.0.s8 %v2059
      %v2061 = vlaneseq
      %v2062 = vshrl.u32 %v2061, 7
      %v2063 = vsub.s32 %v2060, %v2062
      %v2064 = vrot.slane %v2055, %v2063
      %v2066 = vunpack.c.l.s4 1983009808
      %v2067 = vunpack.c.0.s8 %v2066
      %v2068 = vlaneseq
      %v2069 = vshrl.u32 %v2068, 7
      %v2070 = vsub.s32 %v2067, %v2069
      %v2071 = vrot.slane %v2057, %v2070
      %2072 = vrot.lane.b32.xlu0 %v2064, 92
      %v2073 = vpop.permute.xlu0 %2072
      %2074 = vrot.lane.b32.xlu0 %v2071, 92
      %v2075 = vpop.permute.xlu0 %2074
      %v2076 = vrot.slane %v2073, 4
      %v2077 = vrot.slane %v2075, 4
      %v2078 = vsel %vm1927, %v2076, %v2077
      %vm2079 = vcmask 752640
      %v2080 = vsel %vm2079, %v2073, %v2078
      %2083 = vst [vmem:[#allocation3 + $0x24] sm:$0x33] %v2080
      %2084 = vst.msk [vmem:[#allocation3 + $0x2c] sm:$0x3] %vm1902, %v2075
      %v2085 = vld [vmem:[#allocation2] sm:$0x3f]
      %v2087 = vcombine.low %v2085, %v2085
      %v2089 = vunpack.c.l.s4 1983009808
      %v2090 = vunpack.c.0.s8 %v2089
      %v2091 = vlaneseq
      %v2092 = vshrl.u32 %v2091, 7
      %v2093 = vsub.s32 %v2090, %v2092
      %v2094 = vrot.slane %v2087, %v2093
      %v2096 = vunpack.c.l.s4 1983009808
      %v2097 = vunpack.c.0.s8 %v2096
      %v2098 = vlaneseq
      %v2099 = vshrl.u32 %v2098, 7
      %v2100 = vsub.s32 %v2097, %v2099
      %v2101 = vrot.slane %v2085, %v2100
      %2102 = vrot.lane.b32.xlu0 %v2094, 91
      %v2103 = vpop.permute.xlu0 %2102
      %2104 = vrot.lane.b32.xlu0 %v2101, 91
      %v2105 = vpop.permute.xlu0 %2104
      %v2106 = vrot.slane %v2103, 4
      %v2107 = vrot.slane %v2105, 4
      %v2108 = vsel %vm1927, %v2106, %v2107
      %vm2109 = vcmask 744448
      %v2110 = vsel %vm2109, %v2103, %v2108
      %2113 = vst [vmem:[#allocation3 + $0x24] sm:$0xcc] %v2110
      %2114 = vst.msk [vmem:[#allocation3 + $0x2c] sm:$0xc] %vm1933, %v2105
      %v2115 = vld [vmem:[#allocation2] sm:$0x3f]
      %v2117 = vcombine.high %v2115, %v2115
      %v2119 = vunpack.c.l.s4 1983009808
      %v2120 = vunpack.c.0.s8 %v2119
      %v2121 = vlaneseq
      %v2122 = vshrl.u32 %v2121, 7
      %v2123 = vsub.s32 %v2120, %v2122
      %v2124 = vrot.slane %v2115, %v2123
      %v2126 = vunpack.c.l.s4 1983009808
      %v2127 = vunpack.c.0.s8 %v2126
      %v2128 = vlaneseq
      %v2129 = vshrl.u32 %v2128, 7
      %v2130 = vsub.s32 %v2127, %v2129
      %v2131 = vrot.slane %v2117, %v2130
      %2132 = vrot.lane.b32.xlu0 %v2124, 90
      %v2133 = vpop.permute.xlu0 %2132
      %2134 = vrot.lane.b32.xlu0 %v2131, 90
      %v2135 = vpop.permute.xlu0 %2134
      %v2136 = vrot.slane %v2133, 4
      %v2137 = vrot.slane %v2135, 4
      %v2138 = vsel %vm1927, %v2136, %v2137
      %vm2139 = vcmask 736256
      %v2140 = vsel %vm2139, %v2133, %v2138
      %2143 = vst [vmem:[#allocation3 + $0x30] sm:$0x33] %v2140
      %2144 = vst.msk [vmem:[#allocation3 + $0x38] sm:$0x3] %vm1902, %v2135
      %v2145 = vld [vmem:[%s3] sm:$0xf]
      %v2146 = vld [vmem:[#allocation3] sm:$0xff]
      %v2147 = vld [vmem:[#allocation3 + $0x8] sm:$0xf]
      %v2148 = vld [vmem:[#allocation3 + $0xc] sm:$0xff]
      %v2149 = vld [vmem:[#allocation3 + $0x14] sm:$0xf]
      %v2150 = vld [vmem:[#allocation3 + $0x18] sm:$0xff]
      %v2151 = vld [vmem:[#allocation3 + $0x20] sm:$0xf]
      %v2152 = vld [vmem:[#allocation3 + $0x24] sm:$0xff]
      %v2153 = vld [vmem:[#allocation3 + $0x2c] sm:$0xf]
      %v2154 = vld [vmem:[#allocation3 + $0x30] sm:$0x33]
      %v2155 = vld [vmem:[#allocation3 + $0x38] sm:$0x3]
      %v2166 = vunpack.c.l.b16 %v2146
      %v2167 = vunpack.c.h.b16 %v2146
      %v2168 = vunpack.c.l.b16 %v2147
      %v2169 = vunpack.c.l.b16 %v2148
      %v2170 = vunpack.c.h.b16 %v2148
      %v2171 = vunpack.c.l.b16 %v2149
      %v2172 = vunpack.c.l.b16 %v2150
      %v2173 = vunpack.c.h.b16 %v2150
      %v2174 = vunpack.c.l.b16 %v2151
      %v2175 = vunpack.c.l.b16 %v2152
      %v2176 = vunpack.c.h.b16 %v2152
      %v2177 = vunpack.c.l.b16 %v2153
      %v2178 = vunpack.c.l.b16 %v2154
      %v2179 = vunpack.c.h.b16 %v2154
      %v2180 = vunpack.c.l.b16 %v2155
      %v2181 = vpack.c.b16 %v2169, %v2166
      %v2182 = vpack.c.b16 %v2170, %v2167
      %v2183 = vpack.c.b16 %v2171, %v2168
      %v2184 = vpack.c.b16 %v2175, %v2172
      %v2185 = vpack.c.b16 %v2176, %v2173
      %v2186 = vpack.c.b16 %v2177, %v2174
      %v2187 = vpack.c.b16 %v2178, %v2178
      %v2188 = vpack.c.b16 %v2179, %v2179
      %v2189 = vpack.c.b16 %v2180, %v2180
      %vm2196 = vcmask 293888
      %v2198 = vsel %vm2196, %v2145, 0
      %v2201 = vsel %vm199, %v2187, 0
      %v2204 = vsel %vm199, %v2188, 0
      %v2207 = vsel %vm199, %v2189, 0
      %2209 = vmatprep.subr.bf16.mxu0 %v2182
      %2210 = vmatpush1.bf16.msra.mxu0 %v2181
      %2211 = vmatprep.subr.bf16.mxu0 %v2185
      %2212 = vmatpush1.bf16.msra.mxu0 %v2184
      %2213 = vmatprep.subr.bf16.mxu0 %v2204
      %2214 = vmatpush1.bf16.msra.mxu0 %v2201
      %2215 = vmatprep.subr.bf16.mxu0 0
      %2216 = vmatpush1.bf16.msra.mxu0 0
      %2217 = vmatprep.subr.bf16.mxu0 0
      %2218 = vmatpush1.bf16.msra.mxu0 0
      %2219 = vmatprep.subr.bf16.mxu0 0
      %2220 = vmatpush1.bf16.msra.mxu0 0
      %2221 = vmatprep.subr.bf16.mxu0 0
      %2222 = vmatpush1.bf16.msra.mxu0 0
      %2223 = vmatprep.subr.bf16.mxu0 0
      %2224 = vmatpush1.bf16.msra.mxu0 0
      %2225 = vmatprep.subr.bf16.mxu0 0
      %2226 = vmatpush1.bf16.msra.mxu0 0
      %2227 = vmatprep.subr.bf16.mxu0 0
      %2228 = vmatpush1.bf16.msra.mxu0 0
      %2229 = vmatprep.subr.bf16.mxu0 0
      %2230 = vmatpush1.bf16.msra.mxu0 0
      %2231 = vmatprep.subr.bf16.mxu0 0
      %2232 = vmatpush1.bf16.msra.mxu0 0
      %2233 = vmatprep.subr.bf16.mxu0 0
      %2234 = vmatpush1.bf16.msra.mxu0 0
      %2235 = vmatprep.subr.bf16.mxu0 0
      %2236 = vmatpush1.bf16.msra.mxu0 0
      %2237 = vmatprep.subr.bf16.mxu0 0
      %2238 = vmatpush1.bf16.msra.mxu0 0
      %2239 = vmatprep.subr.bf16.mxu0 0
      %2240 = vmatpush1.bf16.msra.mxu0 0
      %2241 = vmatprep.mubr.bf16.mxu0 0
      %2242 = vmatmul.mubr.bf16.gmra.mrb[0].mxu0 %v2198
      %v2243 = vpop.f32.mrb[0].mxu0
      %v2244 = vadd.f32 0.0, %v2243
      %v2245 = vpop.f32.mrb[0].mxu0
      %v2246 = vadd.f32 0.0, %v2245
      %v2247 = vpop.f32.mrb[0].mxu0
      %v2248 = vpop.f32.mrb[0].mxu0
      %2249 = vdwg.mxu0
      %2250 = vmatprep.subr.bf16.mxu0 0
      %2251 = vmatpush1.bf16.msra.mxu0 %v2183
      %2252 = vmatprep.subr.bf16.mxu0 0
      %2253 = vmatpush1.bf16.msra.mxu0 %v2186
      %2254 = vmatprep.subr.bf16.mxu0 0
      %2255 = vmatpush1.bf16.msra.mxu0 %v2207
      %2256 = vmatprep.subr.bf16.mxu0 0
      %2257 = vmatpush1.bf16.msra.mxu0 0
      %2258 = vmatprep.subr.bf16.mxu0 0
      %2259 = vmatpush1.bf16.msra.mxu0 0
      %2260 = vmatprep.subr.bf16.mxu0 0
      %2261 = vmatpush1.bf16.msra.mxu0 0
      %2262 = vmatprep.subr.bf16.mxu0 0
      %2263 = vmatpush1.bf16.msra.mxu0 0
      %2264 = vmatprep.subr.bf16.mxu0 0
      %2265 = vmatpush1.bf16.msra.mxu0 0
      %2266 = vmatprep.subr.bf16.mxu0 0
      %2267 = vmatpush1.bf16.msra.mxu0 0
      %2268 = vmatprep.subr.bf16.mxu0 0
      %2269 = vmatpush1.bf16.msra.mxu0 0
      %2270 = vmatprep.subr.bf16.mxu0 0
      %2271 = vmatpush1.bf16.msra.mxu0 0
      %2272 = vmatprep.subr.bf16.mxu0 0
      %2273 = vmatpush1.bf16.msra.mxu0 0
      %2274 = vmatprep.subr.bf16.mxu0 0
      %2275 = vmatpush1.bf16.msra.mxu0 0
      %2276 = vmatprep.subr.bf16.mxu0 0
      %2277 = vmatpush1.bf16.msra.mxu0 0
      %2278 = vmatprep.subr.bf16.mxu0 0
      %2279 = vmatpush1.bf16.msra.mxu0 0
      %2280 = vmatprep.subr.bf16.mxu0 0
      %2281 = vmatpush1.bf16.msra.mxu0 0
      %2282 = vmatprep.mubr.bf16.mxu0 0
      %2283 = vmatmul.mubr.bf16.gmra.mrb[0].mxu0 %v2198
      %v2284 = vpop.f32.mrb[0].mxu0
      %v2285 = vadd.f32 0.0, %v2284
      %v2286 = vpop.f32.mrb[0].mxu0
      %v2287 = vpop.f32.mrb[0].mxu0
      %v2288 = vpop.f32.mrb[0].mxu0
      %2289 = vdwg.mxu0
      %vm2290 = vcmask 130048
      %2291 = vst.msk [vmem:[%s197] sm:$0xff] %vm2290, %v2244
      %2293 = vrot.lane.b32.xlu0 %v2244, 126
      %v2294 = vpop.permute.xlu0 %2293
      %vm2296 = vcmask 261248
      %2297 = vst.msk [vmem:[%s197] sm:$0xff] %vm2296, %v2294
      %2298 = vrot.lane.b32.xlu0 %v2244, 124
      %v2299 = vpop.permute.xlu0 %2298
      %vm2301 = vcmask 392448
      %2302 = vst.msk [vmem:[%s197] sm:$0xff] %vm2301, %v2299
      %2303 = vrot.lane.b32.xlu0 %v2244, 122
      %v2304 = vpop.permute.xlu0 %2303
      %vm2306 = vcmask 523648
      %2307 = vst.msk [vmem:[%s197] sm:$0xff] %vm2306, %v2304
      %2308 = vrot.lane.b32.xlu0 %v2244, 120
      %v2309 = vpop.permute.xlu0 %2308
      %vm2311 = vcmask 654848
      %2312 = vst.msk [vmem:[%s197] sm:$0xff] %vm2311, %v2309
      %2313 = vrot.lane.b32.xlu0 %v2244, 118
      %v2314 = vpop.permute.xlu0 %2313
      %vm2316 = vcmask 786048
      %2317 = vst.msk [vmem:[%s197] sm:$0xff] %vm2316, %v2314
      %2318 = vrot.lane.b32.xlu0 %v2244, 116
      %v2319 = vpop.permute.xlu0 %2318
      %vm2321 = vcmask 917248
      %2322 = vst.msk [vmem:[%s197] sm:$0xff] %vm2321, %v2319
      %2324 = vrot.lane.b32.xlu0 %v2244, 114
      %v2325 = vpop.permute.xlu0 %2324
      %2326 = vrot.lane.b32.xlu0 %v2246, 114
      %v2327 = vpop.permute.xlu0 %2326
      %vm2328 = vcmask 932864
      %v2329 = vsel %vm2328, %v2325, %v2327
      %vm2331 = vcmask 1048448
      %2332 = vst.msk [vmem:[%s197] sm:$0xff] %vm2331, %v2329
      %2333 = vrot.lane.b32.xlu0 %v2246, 112
      %v2334 = vpop.permute.xlu0 %2333
      %2336 = vst.msk [vmem:[%s197 + $0x8] sm:$0xff] %vm2290, %v2334
      %2337 = vrot.lane.b32.xlu0 %v2246, 110
      %v2338 = vpop.permute.xlu0 %2337
      %2340 = vst.msk [vmem:[%s197 + $0x8] sm:$0xff] %vm2296, %v2338
      %2341 = vrot.lane.b32.xlu0 %v2246, 108
      %v2342 = vpop.permute.xlu0 %2341
      %2344 = vst.msk [vmem:[%s197 + $0x8] sm:$0xff] %vm2301, %v2342
      %2345 = vrot.lane.b32.xlu0 %v2246, 106
      %v2346 = vpop.permute.xlu0 %2345
      %2348 = vst.msk [vmem:[%s197 + $0x8] sm:$0xff] %vm2306, %v2346
      %2349 = vrot.lane.b32.xlu0 %v2246, 104
      %v2350 = vpop.permute.xlu0 %2349
      %2352 = vst.msk [vmem:[%s197 + $0x8] sm:$0xff] %vm2311, %v2350
      %2353 = vrot.lane.b32.xlu0 %v2246, 102
      %v2354 = vpop.permute.xlu0 %2353
      %2356 = vst.msk [vmem:[%s197 + $0x8] sm:$0xff] %vm2316, %v2354
      %2358 = vrot.lane.b32.xlu0 %v2246, 100
      %v2359 = vpop.permute.xlu0 %2358
      %2360 = vrot.lane.b32.xlu0 %v2285, 100
      %v2361 = vpop.permute.xlu0 %2360
      %vm2362 = vcmask 818176
      %v2363 = vsel %vm2362, %v2359, %v2361
      %2365 = vst.msk [vmem:[%s197 + $0x8] sm:$0xff] %vm2321, %v2363
      %2366 = vrot.lane.b32.xlu0 %v2285, 98
      %v2367 = vpop.permute.xlu0 %2366
      %2369 = vst.msk [vmem:[%s197 + $0x8] sm:$0xff] %vm2331, %v2367
      %p2370 = scmp.lt.s32.totalorder %s15, 1
      %s2371 = scalar_select %p2370, %s15, 1
      %s2372 = smul.addr %s2371, 2
      %s2373 = smul.addr %s2372, 8
      %s2374 = scalar_lea.vmem %s4, %s2373
      // Predicated region
      $region37: #{iconv2d_forward.1} parent=35 // pred_check
        %p2375 = pneg %p122
      $region38: #{iconv2d_forward.1} parent=35 // pred_check_branch
        %2377 = sbr.rel (%p2375) target = $region40
      $region39: #{iconv2d_forward.1} parent=35 // pred_region
        _
      $region40: #{iconv2d_forward.1} parent=35 // pred_fallthru
        _
    $region36: #{iconv2d_forward.1} parent=5 // pred_fallthru
      _
    %p2378 = scmp.le.s32.totalorder 2, %s10
    // Predicated region
    $region41: #{iconv2d_forward.1} parent=5 // pred_check
      %p2379 = pneg %p2378
    $region42: #{iconv2d_forward.1} parent=5 // pred_check_branch
      %2381 = sbr.rel (%p2379) target = $region44
    $region43: #{iconv2d_forward.1} parent=5 // pred_region
      %s2382 = ssub.s32 %s10, 2
      // Predicated region
      $region45: #{iconv2d_forward.1} parent=43 // pred_check
        %p2383 = pneg %p128
      $region46: #{iconv2d_forward.1} parent=43 // pred_check_branch
        %2385 = sbr.rel (%p2383) target = $region48
      $region47: #{iconv2d_forward.1} parent=43 // pred_region
        %p2386 = scmp.lt.s32.totalorder %s16, 1
        %s2387 = scalar_select %p2386, %s16, 1
        %s2388 = smul.addr %s2387, 2
        %s2389 = smul.addr %s2388, 8
        %s2390 = scalar_lea.vmem %s4, %s2389
      $region48: #{iconv2d_forward.1} parent=43 // pred_fallthru
        _
    $region44: #{iconv2d_forward.1} parent=5 // pred_fallthru
      _
  $region6: #{iconv2d_forward.1} parent=0 // loop_footer
    %s14 = sadd.s32 1, %s10
  $region7: #{iconv2d_forward.1} parent=0 // loop_footer_branch
    %9 = sbr.rel target = $region3
  $region8: #{iconv2d_forward.1} parent=0 // loop_exit
    _

</llo_original>
